<compile_context>
chip_gen: v5e
topology: v5e:2x2
jax: 0.10.0
libtpu: 0.0.40
codegen_flags: <defaults>
</compile_context>

<pallas_src>
import jax
import jax.numpy as jnp
from jax.experimental import pallas as pl
from jax.experimental.pallas import tpu as pltpu


TILE_B = 8          # batch tile (multiple of 8 sublanes); shrunk to B when B < 8
TILE_S_MAX = 128    # cap on the sequence chunk streamed per grid step
OUT_PAD = 128       # lane-dense packed output: col 0 = score, col 1 = tbert_out
VMEM_LIMIT_BYTES = 48 * 1024 * 1024   # explicit scoped-VMEM cap (< v7x 64 MiB physical)


# -------------------------------------------------------------------------
# Fused kernel: TBert running max-pool over S chunks (both streams) + epilogue
# (cosine sim + Output_Layer MLP) under pl.when(last S chunk).
# -------------------------------------------------------------------------
def fused_bert_head_kernel(h1_ref, m1_ref, h2_ref, m2_ref, sI_ref, sII_ref,
                           wf1_ref, wf2_ref, vecs_ref, sc_ref,
                           out_ref, tI_acc, tII_acc):
    f32 = jnp.float32
    s = pl.program_id(1)
    ns = pl.num_programs(1)

    # ---- init running-max accumulators at the first S chunk of each batch tile ----
    @pl.when(s == 0)
    def _init():
        tI_acc[...] = jnp.full(tI_acc.shape, -jnp.inf, f32)
        tII_acc[...] = jnp.full(tII_acc.shape, -jnp.inf, f32)

    # ---- TBert masked max-pool on this S chunk (streamed dtype, e.g. bf16):
    #      mask is (tile_b, tile_s, 1) so it lane-broadcasts against the hidden
    #      block with no relayout; chunk max is exact, cast to f32 afterwards. ----
    c1 = jnp.max(h1_ref[...] * m1_ref[...], axis=1).astype(f32)     # (TB, H)
    c2 = jnp.max(h2_ref[...] * m2_ref[...], axis=1).astype(f32)     # (TB, H)
    tI_acc[...] = jnp.maximum(tI_acc[...], c1)
    tII_acc[...] = jnp.maximum(tII_acc[...], c2)

    # ---- epilogue: runs once per batch tile, on the last S chunk ----
    @pl.when(s == ns - 1)
    def _epilogue():
        vecs = vecs_ref[...]                 # (8, HID) packed row-vector params (f32)
        bf_b = vecs[0:1, :]                  # f_linear bias
        a2 = vecs[1:2, :]                    # LayerNorm a_2
        b2 = vecs[2:3, :]                    # LayerNorm b_2
        wo = vecs[3:4, :]                    # o_linear weight row (1, HID)
        wfc1 = vecs[4:5, :]                  # f_conection cols, zero-padded QSZ->HID
        wfc2 = vecs[5:6, :]
        bfc = vecs[6:7, :]                   # f_conection bias, zero-padded
        woc = vecs[7:8, :]                   # o_conection weight row, zero-padded
        bo = sc_ref[0]                       # o_linear bias (scalar, SMEM)
        boc = sc_ref[1]                      # o_conection bias (scalar, SMEM)

        tI = tI_acc[...]                     # (TB, H) f32 pooled
        tII = tII_acc[...]

        # -- SBert cosine similarity (torch semantics: clamp the product of norms) --
        a = sI_ref[...].astype(f32)
        b = sII_ref[...].astype(f32)
        dot = jnp.sum(a * b, axis=-1, keepdims=True)
        na = jnp.sqrt(jnp.sum(a * a, axis=-1, keepdims=True))
        nb = jnp.sqrt(jnp.sum(b * b, axis=-1, keepdims=True))
        sbert_score = dot / jnp.maximum(na * nb, 1e-8)               # (TB, 1)

        # -- f_linear over cat([tI, tII], -1) as split matmuls (MXU, f32 acc) --
        x = (jnp.dot(tI, wf1_ref[...], preferred_element_type=f32)
             + jnp.dot(tII, wf2_ref[...], preferred_element_type=f32)
             + bf_b)                                                 # (TB, HID)

        # -- custom LayerNorm: unbiased std (torch x.std default), eps added to std --
        hid = x.shape[-1]
        mean = jnp.mean(x, axis=-1, keepdims=True)
        var_u = jnp.sum((x - mean) ** 2, axis=-1, keepdims=True) * (1.0 / (hid - 1))
        std = jnp.sqrt(var_u)
        x = a2 * (x - mean) / (std + 1e-6) + b2

        x = jnp.maximum(x, 0.0)              # relu
        # TODO(synk): nn.Dropout(0.1) is identity here (inference semantics).

        # -- o_linear: N = num_classes = 1 -> VPU mul + lane reduce (no MXU) --
        t_lin = jnp.sum(x * wo, axis=-1, keepdims=True) + bo          # (TB, 1)
        tbert_out = jnp.tanh(t_lin)

        # -- f_conection over cat([tbert_out, sbert_score], -1): K = 1 -> broadcast.
        #    Lanes beyond QSZ carry zero weights/bias so they contribute nothing. --
        conn = tbert_out * wfc1 + sbert_score * wfc2 + bfc            # (TB, HID)
        conn = jnp.maximum(conn, 0.0)
        conn = jnp.sum(conn * woc, axis=-1, keepdims=True) + boc      # (TB, 1)

        score = (jax.nn.sigmoid(conn) + sbert_score) * 0.5            # (TB, 1)

        # -- lane-dense packed output: unmasked full-width vst --
        tb, outw = out_ref.shape
        col = jax.lax.broadcasted_iota(jnp.int32, (tb, outw), 1)
        out_ref[...] = jnp.where(col == 0, score,
                                 jnp.where(col == 1, tbert_out, 0.0))


# -------------------------------------------------------------------------
# Tiling helpers
# -------------------------------------------------------------------------
def _sublane_multiple(dtype):
    # second-minor block granularity: 8 for 4-byte, 16 for 2-byte, 32 for 1-byte
    return max(8, 32 // jnp.dtype(dtype).itemsize)


def _choose_tile_s(S, gran, cap=TILE_S_MAX):
    # largest aligned divisor of S up to `cap`; else stream the full sequence
    t = min(cap, S)
    t -= t % gran
    while t >= gran:
        if S % t == 0:
            return t
        t -= gran
    return S


# -------------------------------------------------------------------------
# Wrapper: build specs, call the single fused kernel, slice packed outputs.
# -------------------------------------------------------------------------
def bert_model_forward(feat1, feat2, params, *, tile_b=TILE_B, tile_s=None):
    h1, m1, sI = feat1["bert_hidden"], feat1["attention_mask"], feat1["sbert_emb"]
    h2, m2, sII = feat2["bert_hidden"], feat2["attention_mask"], feat2["sbert_emb"]

    B, S, H = h1.shape
    Ds = sI.shape[-1]
    f32 = jnp.float32

    # Hidden states stream in their native encoder dtype (bf16 recommended: halves
    # HBM traffic and per-tile VMEM vs f32).  The big [B,S,H] tensors are NOT padded
    # or cast in the wrapper (that would cost a full extra HBM pass).
    gran = _sublane_multiple(h1.dtype)
    if tile_s is None:
        tile_s = _choose_tile_s(S, gran)
    assert tile_s == S or (S % tile_s == 0 and tile_s % gran == 0), \
        "tile_s must divide S and be a multiple of the sublane granularity"

    if B < tile_b:
        tile_b = B                     # tiny batch: single full block, no padding
    nb = pl.cdiv(B, tile_b)            # ragged last batch tile; junk rows sliced off
    ns = S // tile_s
    out_rows = nb * tile_b
    # NOTE: for v7x megacore utilisation the caller should keep nb >= 2 (B >= 2*tile_b)
    # so the "parallel" batch axis actually shards across both TensorCores.

    # Masks are tiny [B,S] arrays: cast to the streaming dtype and add the lane axis
    # so their VMEM layout matches the hidden blocks (pure VPU broadcast, no relayout).
    m1c = m1.astype(h1.dtype)[:, :, None]
    m2c = m2.astype(h2.dtype)[:, :, None]

    hid3 = lambda i, s: (i, s, 0)
    batch2 = lambda i, s: (i, 0)
    fixed2 = lambda i, s: (0, 0)

    in_specs = [
        pl.BlockSpec((tile_b, tile_s, H), hid3),        # hidden I   (streamed chunks)
        pl.BlockSpec((tile_b, tile_s, 1), hid3),        # mask I
        pl.BlockSpec((tile_b, tile_s, H), hid3),        # hidden II
        pl.BlockSpec((tile_b, tile_s, 1), hid3),        # mask II
        pl.BlockSpec((tile_b, Ds), batch2),             # sbert emb I  (resident per i)
        pl.BlockSpec((tile_b, Ds), batch2),             # sbert emb II
        pl.BlockSpec(params["wf1"].shape, fixed2),      # f_linear W half 1 (pre-T)
        pl.BlockSpec(params["wf2"].shape, fixed2),      # f_linear W half 2 (pre-T)
        pl.BlockSpec(params["vecs"].shape, fixed2),     # packed (8, HID) row params
        pl.BlockSpec(memory_space=pltpu.MemorySpace.SMEM),  # [bo, boc] scalars
    ]

    packed = pl.pallas_call(
        fused_bert_head_kernel,
        out_shape=jax.ShapeDtypeStruct((out_rows, OUT_PAD), f32),
        grid=(nb, ns),
        in_specs=in_specs,
        out_specs=pl.BlockSpec((tile_b, OUT_PAD), batch2),
        scratch_shapes=[pltpu.VMEM((tile_b, H), f32),   # running max, stream I
                        pltpu.VMEM((tile_b, H), f32)],  # running max, stream II
        compiler_params=pltpu.CompilerParams(
            # batch tiles shard across v7x's 2 TCs when nb >= 2; the S axis is the
            # running-max reduction -> "arbitrary" (and last in the grid).
            dimension_semantics=("parallel", "arbitrary"),
            vmem_limit_bytes=VMEM_LIMIT_BYTES),
    )(h1, m1c, h2, m2c, sI, sII,
      params["wf1"], params["wf2"], params["vecs"], params["scalars"])

    score = packed[:B, 0:1]
    tbert_out = packed[:B, 1:2]
    return score, tbert_out


# -------------------------------------------------------------------------
# Parameter init (Output_Layer(num_classes=1, input_size=2*H, hidden_size=HID)).
# Linear weights stored transposed (in, out); all 1-row vectors packed into a single
# (8, HID) array (QSZ-wide rows zero-padded); the two scalar biases go to SMEM.
# -------------------------------------------------------------------------
def init_params(key, lstm_hidden, hidden_size, num_classes, dtype=jnp.float32):
    assert num_classes == 1, "Bert_Model uses Output_Layer(1, ...)"
    qsz = hidden_size // 4
    ks = jax.random.split(key, 8)
    scale = 0.1
    wf = scale * jax.random.normal(ks[0], (2 * lstm_hidden, hidden_size), dtype)
    wo = scale * jax.random.normal(ks[1], (hidden_size, num_classes), dtype)
    wfc = scale * jax.random.normal(ks[2], (2 * num_classes, qsz), dtype)
    woc = scale * jax.random.normal(ks[3], (qsz, num_classes), dtype)
    bf = scale * jax.random.normal(ks[4], (hidden_size,), dtype)
    bo = scale * jax.random.normal(ks[5], (1,), dtype)
    bfc = scale * jax.random.normal(ks[6], (qsz,), dtype)
    boc = scale * jax.random.normal(ks[7], (1,), dtype)

    def pad_row(v):  # (n,) -> (1, hidden_size), zero-padded on the right
        return jnp.pad(v, (0, hidden_size - v.shape[0]))[None, :]

    vecs = jnp.concatenate([
        pad_row(bf),                                   # row 0: f_linear bias
        pad_row(jnp.ones((hidden_size,), dtype)),      # row 1: LayerNorm a_2
        pad_row(jnp.zeros((hidden_size,), dtype)),     # row 2: LayerNorm b_2
        pad_row(wo[:, 0]),                             # row 3: o_linear weight row
        pad_row(wfc[0]),                               # row 4: f_conection col 0
        pad_row(wfc[1]),                               # row 5: f_conection col 1
        pad_row(bfc),                                  # row 6: f_conection bias
        pad_row(woc[:, 0]),                            # row 7: o_conection weight row
    ], axis=0).astype(jnp.float32)                     # (8, hidden_size)

    return {
        "wf1": wf[:lstm_hidden].astype(jnp.float32),   # (H, HID)
        "wf2": wf[lstm_hidden:].astype(jnp.float32),   # (H, HID)
        "vecs": vecs,
        "scalars": jnp.concatenate([bo, boc]).astype(jnp.float32),   # (2,) -> SMEM
    }


if __name__ == "__main__":
    # Small shapes consistent with the forward (scaled down from 768/256):
    B, S = 2, 32     # batch, sequence length
    Ds = 64          # sbert sentence-embedding dim
    H = 64           # lstm_hidden_size (bert hidden dim)
    HID = 32         # Output_Layer hidden_size
    C = 1            # num_classes

    key = jax.random.PRNGKey(0)
    kp, k1, k2, k3, k4 = jax.random.split(key, 5)
    params = init_params(kp, H, HID, C)

    def make_features(ka, kb):
        mask = jnp.ones((B, S), jnp.float32).at[:, S - 5:].set(0.0)
        return {
            "sbert_emb": jax.random.normal(ka, (B, Ds), jnp.float32),
            # encoder hidden states are streamed in bf16 (halves HBM traffic vs f32)
            "bert_hidden": jax.random.normal(kb, (B, S, H), jnp.float32)
                               .astype(jnp.bfloat16),
            "attention_mask": mask,
        }

    feat1 = make_features(k1, k2)
    feat2 = make_features(k3, k4)

    # tile_s=16 -> two S chunks, exercising the running-max accumulator path.
    score, tbert_out = bert_model_forward(feat1, feat2, params, tile_s=16)
    jax.block_until_ready((score, tbert_out))

    assert score.shape == (B, C) and tbert_out.shape == (B, C)
    assert bool(jnp.all(jnp.isfinite(score))) and bool(jnp.all(jnp.isfinite(tbert_out)))
    print("KERNEL_OK")
</pallas_src>

<mosaic_0001>
module attributes {stable_mosaic.version = 11 : i64} {
  func.func @fused_bert_head_kernel(%arg0: i32, %arg1: i32, %arg2: memref<2x16x64xbf16, #tpu.memory_space<vmem>>, %arg3: memref<2x16x1xbf16, #tpu.memory_space<vmem>>, %arg4: memref<2x16x64xbf16, #tpu.memory_space<vmem>>, %arg5: memref<2x16x1xbf16, #tpu.memory_space<vmem>>, %arg6: memref<2x64xf32, #tpu.memory_space<vmem>>, %arg7: memref<2x64xf32, #tpu.memory_space<vmem>>, %arg8: memref<64x32xf32, #tpu.memory_space<vmem>>, %arg9: memref<64x32xf32, #tpu.memory_space<vmem>>, %arg10: memref<8x32xf32, #tpu.memory_space<vmem>>, %arg11: memref<2xf32, #tpu.memory_space<smem>>, %arg12: memref<2x128xf32, #tpu.memory_space<vmem>>, %arg13: memref<2x64xf32, #tpu.memory_space<vmem>>, %arg14: memref<2x64xf32, #tpu.memory_space<vmem>>) attributes {dimension_semantics = [#tpu.dimension_semantics<parallel>, #tpu.dimension_semantics<arbitrary>], iteration_bounds = array<i64: 1, 2>, scalar_prefetch = 0 : i64, scratch_operands = 2 : i64, tpu.core_type = #tpu.core_type<tc>, window_params = [{transform_indices = @transform_0, window_bounds = array<i64: 2, 16, 64>}, {transform_indices = @transform_1, window_bounds = array<i64: 2, 16, 1>}, {transform_indices = @transform_2, window_bounds = array<i64: 2, 16, 64>}, {transform_indices = @transform_3, window_bounds = array<i64: 2, 16, 1>}, {transform_indices = @transform_4, window_bounds = array<i64: 2, 64>}, {transform_indices = @transform_5, window_bounds = array<i64: 2, 64>}, {pipeline_mode = #tpu.pipeline_mode<synchronous>, transform_indices = @transform_6, window_bounds = array<i64: 64, 32>}, {pipeline_mode = #tpu.pipeline_mode<synchronous>, transform_indices = @transform_7, window_bounds = array<i64: 64, 32>}, {pipeline_mode = #tpu.pipeline_mode<synchronous>, transform_indices = @transform_8, window_bounds = array<i64: 8, 32>}, {transform_indices = @transform_9, window_bounds = array<i64: 2>}, {transform_indices = @transform_10, window_bounds = array<i64: 2, 128>}]} {
    %c0_i32 = arith.constant 0 : i32
    %0 = arith.cmpi eq, %arg1, %c0_i32 : i32
    %1 = arith.extui %0 : i1 to i32
    %c0_i32_0 = arith.constant 0 : i32
    %2 = arith.cmpi ne, %1, %c0_i32_0 : i32
    scf.if %2 {
      %cst_22 = arith.constant 0xFF800000 : f32
      %24 = vector.broadcast %cst_22 : f32 to vector<2x64xf32>
      %c0_23 = arith.constant 0 : index
      %c0_24 = arith.constant 0 : index
      %25 = vector.load %arg13[%c0_23, %c0_24] : memref<2x64xf32, #tpu.memory_space<vmem>>, vector<2x64xf32>
      tpu.vector_store %arg13[%c0_23, %c0_24], %24 {strides = array<i32>} : memref<2x64xf32, #tpu.memory_space<vmem>>, vector<2x64xf32>,
      %cst_25 = arith.constant 0xFF800000 : f32
      %26 = vector.broadcast %cst_25 : f32 to vector<2x64xf32>
      %c0_26 = arith.constant 0 : index
      %c0_27 = arith.constant 0 : index
      %27 = vector.load %arg14[%c0_26, %c0_27] : memref<2x64xf32, #tpu.memory_space<vmem>>, vector<2x64xf32>
      tpu.vector_store %arg14[%c0_26, %c0_27], %26 {strides = array<i32>} : memref<2x64xf32, #tpu.memory_space<vmem>>, vector<2x64xf32>,
    } else {
    }
    %c0 = arith.constant 0 : index
    %c0_1 = arith.constant 0 : index
    %c0_2 = arith.constant 0 : index
    %3 = vector.load %arg2[%c0, %c0_1, %c0_2] : memref<2x16x64xbf16, #tpu.memory_space<vmem>>, vector<2x16x64xbf16>
    %c0_3 = arith.constant 0 : index
    %c0_4 = arith.constant 0 : index
    %c0_5 = arith.constant 0 : index
    %4 = vector.load %arg3[%c0_3, %c0_4, %c0_5] : memref<2x16x1xbf16, #tpu.memory_space<vmem>>, vector<2x16x1xbf16>
    %5 = vector.broadcast %4 : vector<2x16x1xbf16> to vector<2x16x64xbf16>
    %6 = arith.mulf %3, %5 : vector<2x16x64xbf16>
    %cst = arith.constant dense<0xFF80> : vector<2x64xbf16>
    %7 = vector.multi_reduction <maximumf>, %6, %cst [1] : vector<2x16x64xbf16> to vector<2x64xbf16>
    %8 = arith.extf %7 : vector<2x64xbf16> to vector<2x64xf32>
    %c0_6 = arith.constant 0 : index
    %c0_7 = arith.constant 0 : index
    %c0_8 = arith.constant 0 : index
    %9 = vector.load %arg4[%c0_6, %c0_7, %c0_8] : memref<2x16x64xbf16, #tpu.memory_space<vmem>>, vector<2x16x64xbf16>
    %c0_9 = arith.constant 0 : index
    %c0_10 = arith.constant 0 : index
    %c0_11 = arith.constant 0 : index
    %10 = vector.load %arg5[%c0_9, %c0_10, %c0_11] : memref<2x16x1xbf16, #tpu.memory_space<vmem>>, vector<2x16x1xbf16>
    %11 = vector.broadcast %10 : vector<2x16x1xbf16> to vector<2x16x64xbf16>
    %12 = arith.mulf %9, %11 : vector<2x16x64xbf16>
    %cst_12 = arith.constant dense<0xFF80> : vector<2x64xbf16>
    %13 = vector.multi_reduction <maximumf>, %12, %cst_12 [1] : vector<2x16x64xbf16> to vector<2x64xbf16>
    %14 = arith.extf %13 : vector<2x64xbf16> to vector<2x64xf32>
    %c0_13 = arith.constant 0 : index
    %c0_14 = arith.constant 0 : index
    %15 = vector.load %arg13[%c0_13, %c0_14] : memref<2x64xf32, #tpu.memory_space<vmem>>, vector<2x64xf32>
    %16 = arith.maximumf %15, %8 : vector<2x64xf32>
    %c0_15 = arith.constant 0 : index
    %c0_16 = arith.constant 0 : index
    %17 = vector.load %arg13[%c0_15, %c0_16] : memref<2x64xf32, #tpu.memory_space<vmem>>, vector<2x64xf32>
    tpu.vector_store %arg13[%c0_15, %c0_16], %16 {strides = array<i32>} : memref<2x64xf32, #tpu.memory_space<vmem>>, vector<2x64xf32>,
    %c0_17 = arith.constant 0 : index
    %c0_18 = arith.constant 0 : index
    %18 = vector.load %arg14[%c0_17, %c0_18] : memref<2x64xf32, #tpu.memory_space<vmem>>, vector<2x64xf32>
    %19 = arith.maximumf %18, %14 : vector<2x64xf32>
    %c0_19 = arith.constant 0 : index
    %c0_20 = arith.constant 0 : index
    %20 = vector.load %arg14[%c0_19, %c0_20] : memref<2x64xf32, #tpu.memory_space<vmem>>, vector<2x64xf32>
    tpu.vector_store %arg14[%c0_19, %c0_20], %19 {strides = array<i32>} : memref<2x64xf32, #tpu.memory_space<vmem>>, vector<2x64xf32>,
    %c1_i32 = arith.constant 1 : i32
    %21 = arith.cmpi eq, %arg1, %c1_i32 : i32
    %22 = arith.extui %21 : i1 to i32
    %c0_i32_21 = arith.constant 0 : i32
    %23 = arith.cmpi ne, %22, %c0_i32_21 : i32
    scf.if %23 {
      %c0_22 = arith.constant 0 : index
      %c0_23 = arith.constant 0 : index
      %24 = vector.load %arg10[%c0_22, %c0_23] : memref<8x32xf32, #tpu.memory_space<vmem>>, vector<8x32xf32>
      %25 = vector.extract_strided_slice %24 {offsets = [0, 0], sizes = [1, 32], strides = [1, 1]} : vector<8x32xf32> to vector<1x32xf32>
      %26 = vector.extract_strided_slice %24 {offsets = [1, 0], sizes = [1, 32], strides = [1, 1]} : vector<8x32xf32> to vector<1x32xf32>
      %27 = vector.extract_strided_slice %24 {offsets = [2, 0], sizes = [1, 32], strides = [1, 1]} : vector<8x32xf32> to vector<1x32xf32>
      %28 = vector.extract_strided_slice %24 {offsets = [3, 0], sizes = [1, 32], strides = [1, 1]} : vector<8x32xf32> to vector<1x32xf32>
      %29 = vector.extract_strided_slice %24 {offsets = [4, 0], sizes = [1, 32], strides = [1, 1]} : vector<8x32xf32> to vector<1x32xf32>
      %30 = vector.extract_strided_slice %24 {offsets = [5, 0], sizes = [1, 32], strides = [1, 1]} : vector<8x32xf32> to vector<1x32xf32>
      %31 = vector.extract_strided_slice %24 {offsets = [6, 0], sizes = [1, 32], strides = [1, 1]} : vector<8x32xf32> to vector<1x32xf32>
      %32 = vector.extract_strided_slice %24 {offsets = [7, 0], sizes = [1, 32], strides = [1, 1]} : vector<8x32xf32> to vector<1x32xf32>
      %c0_24 = arith.constant 0 : index
      %33 = memref.load %arg11[%c0_24] : memref<2xf32, #tpu.memory_space<smem>>
      %c1 = arith.constant 1 : index
      %34 = memref.load %arg11[%c1] : memref<2xf32, #tpu.memory_space<smem>>
      %c0_25 = arith.constant 0 : index
      %c0_26 = arith.constant 0 : index
      %35 = vector.load %arg13[%c0_25, %c0_26] : memref<2x64xf32, #tpu.memory_space<vmem>>, vector<2x64xf32>
      %c0_27 = arith.constant 0 : index
      %c0_28 = arith.constant 0 : index
      %36 = vector.load %arg14[%c0_27, %c0_28] : memref<2x64xf32, #tpu.memory_space<vmem>>, vector<2x64xf32>
      %c0_29 = arith.constant 0 : index
      %c0_30 = arith.constant 0 : index
      %37 = vector.load %arg6[%c0_29, %c0_30] : memref<2x64xf32, #tpu.memory_space<vmem>>, vector<2x64xf32>
      %c0_31 = arith.constant 0 : index
      %c0_32 = arith.constant 0 : index
      %38 = vector.load %arg7[%c0_31, %c0_32] : memref<2x64xf32, #tpu.memory_space<vmem>>, vector<2x64xf32>
      %39 = arith.mulf %37, %38 : vector<2x64xf32>
      %cst_33 = arith.constant dense<0.000000e+00> : vector<2xf32>
      %40 = vector.multi_reduction <add>, %39, %cst_33 [1] : vector<2x64xf32> to vector<2xf32>
      %41 = vector.shape_cast %40 : vector<2xf32> to vector<2x1xf32>
      %42 = arith.mulf %37, %37 : vector<2x64xf32>
      %cst_34 = arith.constant dense<0.000000e+00> : vector<2xf32>
      %43 = vector.multi_reduction <add>, %42, %cst_34 [1] : vector<2x64xf32> to vector<2xf32>
      %44 = vector.shape_cast %43 : vector<2xf32> to vector<2x1xf32>
      %45 = math.sqrt %44 : vector<2x1xf32>
      %46 = arith.mulf %38, %38 : vector<2x64xf32>
      %cst_35 = arith.constant dense<0.000000e+00> : vector<2xf32>
      %47 = vector.multi_reduction <add>, %46, %cst_35 [1] : vector<2x64xf32> to vector<2xf32>
      %48 = vector.shape_cast %47 : vector<2xf32> to vector<2x1xf32>
      %49 = math.sqrt %48 : vector<2x1xf32>
      %50 = arith.mulf %45, %49 : vector<2x1xf32>
      %cst_36 = arith.constant 9.99999993E-9 : f32
      %51 = vector.broadcast %cst_36 : f32 to vector<2x1xf32>
      %52 = arith.maximumf %50, %51 : vector<2x1xf32>
      %53 = arith.divf %41, %52 : vector<2x1xf32>
      %c0_37 = arith.constant 0 : index
      %c0_38 = arith.constant 0 : index
      %54 = vector.load %arg8[%c0_37, %c0_38] : memref<64x32xf32, #tpu.memory_space<vmem>>, vector<64x32xf32>
      %cst_39 = arith.constant dense<0.000000e+00> : vector<2x32xf32>
      %55 = tpu.matmul %35, %54, %cst_39 {dimension_numbers = #tpu.dot_dimension_numbers<[1], [0], [0], [1], [0, 0, 1, 1], [], []>} : vector<2x64xf32>, vector<64x32xf32>, vector<2x32xf32> -> vector<2x32xf32>
      %c0_40 = arith.constant 0 : index
      %c0_41 = arith.constant 0 : index
      %56 = vector.load %arg9[%c0_40, %c0_41] : memref<64x32xf32, #tpu.memory_space<vmem>>, vector<64x32xf32>
      %cst_42 = arith.constant dense<0.000000e+00> : vector<2x32xf32>
      %57 = tpu.matmul %36, %56, %cst_42 {dimension_numbers = #tpu.dot_dimension_numbers<[1], [0], [0], [1], [0, 0, 1, 1], [], []>} : vector<2x64xf32>, vector<64x32xf32>, vector<2x32xf32> -> vector<2x32xf32>
      %58 = arith.addf %55, %57 : vector<2x32xf32>
      %59 = vector.broadcast %25 : vector<1x32xf32> to vector<2x32xf32>
      %60 = arith.addf %58, %59 : vector<2x32xf32>
      %cst_43 = arith.constant dense<0.000000e+00> : vector<2xf32>
      %61 = vector.multi_reduction <add>, %60, %cst_43 [1] : vector<2x32xf32> to vector<2xf32>
      %62 = vector.shape_cast %61 : vector<2xf32> to vector<2x1xf32>
      %cst_44 = arith.constant 3.200000e+01 : f32
      %63 = vector.broadcast %cst_44 : f32 to vector<2x1xf32>
      %64 = arith.divf %62, %63 : vector<2x1xf32>
      %65 = vector.broadcast %64 : vector<2x1xf32> to vector<2x32xf32>
      %66 = arith.subf %60, %65 : vector<2x32xf32>
      %67 = arith.mulf %66, %66 : vector<2x32xf32>
      %cst_45 = arith.constant dense<0.000000e+00> : vector<2xf32>
      %68 = vector.multi_reduction <add>, %67, %cst_45 [1] : vector<2x32xf32> to vector<2xf32>
      %69 = vector.shape_cast %68 : vector<2xf32> to vector<2x1xf32>
      %cst_46 = arith.constant 0.0322580636 : f32
      %70 = vector.broadcast %cst_46 : f32 to vector<2x1xf32>
      %71 = arith.mulf %69, %70 : vector<2x1xf32>
      %72 = math.sqrt %71 : vector<2x1xf32>
      %73 = vector.broadcast %64 : vector<2x1xf32> to vector<2x32xf32>
      %74 = arith.subf %60, %73 : vector<2x32xf32>
      %75 = vector.broadcast %26 : vector<1x32xf32> to vector<2x32xf32>
      %76 = arith.mulf %75, %74 : vector<2x32xf32>
      %cst_47 = arith.constant 9.99999997E-7 : f32
      %77 = vector.broadcast %cst_47 : f32 to vector<2x1xf32>
      %78 = arith.addf %72, %77 : vector<2x1xf32>
      %79 = vector.broadcast %78 : vector<2x1xf32> to vector<2x32xf32>
      %80 = arith.divf %76, %79 : vector<2x32xf32>
      %81 = vector.broadcast %27 : vector<1x32xf32> to vector<2x32xf32>
      %82 = arith.addf %80, %81 : vector<2x32xf32>
      %cst_48 = arith.constant 0.000000e+00 : f32
      %83 = vector.broadcast %cst_48 : f32 to vector<2x32xf32>
      %84 = arith.maximumf %82, %83 : vector<2x32xf32>
      %85 = vector.broadcast %28 : vector<1x32xf32> to vector<2x32xf32>
      %86 = arith.mulf %84, %85 : vector<2x32xf32>
      %cst_49 = arith.constant dense<0.000000e+00> : vector<2xf32>
      %87 = vector.multi_reduction <add>, %86, %cst_49 [1] : vector<2x32xf32> to vector<2xf32>
      %88 = vector.shape_cast %87 : vector<2xf32> to vector<2x1xf32>
      %89 = vector.broadcast %33 : f32 to vector<2x1xf32>
      %90 = arith.addf %88, %89 : vector<2x1xf32>
      %91 = math.tanh %90 : vector<2x1xf32>
      %92 = vector.broadcast %91 : vector<2x1xf32> to vector<2x32xf32>
      %93 = vector.broadcast %29 : vector<1x32xf32> to vector<2x32xf32>
      %94 = arith.mulf %92, %93 : vector<2x32xf32>
      %95 = vector.broadcast %53 : vector<2x1xf32> to vector<2x32xf32>
      %96 = vector.broadcast %30 : vector<1x32xf32> to vector<2x32xf32>
      %97 = arith.mulf %95, %96 : vector<2x32xf32>
      %98 = arith.addf %94, %97 : vector<2x32xf32>
      %99 = vector.broadcast %31 : vector<1x32xf32> to vector<2x32xf32>
      %100 = arith.addf %98, %99 : vector<2x32xf32>
      %cst_50 = arith.constant 0.000000e+00 : f32
      %101 = vector.broadcast %cst_50 : f32 to vector<2x32xf32>
      %102 = arith.maximumf %100, %101 : vector<2x32xf32>
      %103 = vector.broadcast %32 : vector<1x32xf32> to vector<2x32xf32>
      %104 = arith.mulf %102, %103 : vector<2x32xf32>
      %cst_51 = arith.constant dense<0.000000e+00> : vector<2xf32>
      %105 = vector.multi_reduction <add>, %104, %cst_51 [1] : vector<2x32xf32> to vector<2xf32>
      %106 = vector.shape_cast %105 : vector<2xf32> to vector<2x1xf32>
      %107 = vector.broadcast %34 : f32 to vector<2x1xf32>
      %108 = arith.addf %106, %107 : vector<2x1xf32>
      %109 = arith.negf %108 : vector<2x1xf32>
      %110 = math.exp %109 : vector<2x1xf32>
      %cst_52 = arith.constant 1.000000e+00 : f32
      %111 = vector.broadcast %cst_52 : f32 to vector<2x1xf32>
      %112 = arith.addf %111, %110 : vector<2x1xf32>
      %113 = arith.divf %111, %112 : vector<2x1xf32>
      %114 = arith.addf %113, %53 : vector<2x1xf32>
      %cst_53 = arith.constant 5.000000e-01 : f32
      %115 = vector.broadcast %cst_53 : f32 to vector<2x1xf32>
      %116 = arith.mulf %114, %115 : vector<2x1xf32>
      %117 = tpu.iota {dimensions = array<i32: 1>} : vector<2x128xi32>
      %c0_i32_54 = arith.constant 0 : i32
      %118 = vector.broadcast %c0_i32_54 : i32 to vector<2x128xi32>
      %119 = arith.cmpi eq, %117, %118 : vector<2x128xi32>
      %c1_i32_55 = arith.constant 1 : i32
      %120 = vector.broadcast %c1_i32_55 : i32 to vector<2x128xi32>
      %121 = arith.cmpi eq, %117, %120 : vector<2x128xi32>
      %cst_56 = arith.constant 0.000000e+00 : f32
      %122 = vector.shape_cast %91 : vector<2x1xf32> to vector<2x1xf32>
      %123 = vector.broadcast %122 : vector<2x1xf32> to vector<2x128xf32>
      %124 = vector.broadcast %cst_56 : f32 to vector<2x128xf32>
      %125 = arith.select %121, %123, %124 : vector<2x128xi1>, vector<2x128xf32>
      %126 = vector.shape_cast %116 : vector<2x1xf32> to vector<2x1xf32>
      %127 = vector.broadcast %126 : vector<2x1xf32> to vector<2x128xf32>
      %128 = arith.select %119, %127, %125 : vector<2x128xi1>, vector<2x128xf32>
      %c0_57 = arith.constant 0 : index
      %c0_58 = arith.constant 0 : index
      %129 = vector.load %arg12[%c0_57, %c0_58] : memref<2x128xf32, #tpu.memory_space<vmem>>, vector<2x128xf32>
      tpu.vector_store %arg12[%c0_57, %c0_58], %128 {strides = array<i32>} : memref<2x128xf32, #tpu.memory_space<vmem>>, vector<2x128xf32>,
    } else {
    }
    return
  }
  func.func @transform_0(%arg0: i32, %arg1: i32) -> (i32, i32, i32) {
    %c0_i32 = arith.constant 0 : i32
    %c0_i32_0 = arith.constant 0 : i32
    return %arg0, %arg1, %c0_i32 : i32, i32, i32
  }
  func.func @transform_1(%arg0: i32, %arg1: i32) -> (i32, i32, i32) {
    %c0_i32 = arith.constant 0 : i32
    %c0_i32_0 = arith.constant 0 : i32
    return %arg0, %arg1, %c0_i32 : i32, i32, i32
  }
  func.func @transform_2(%arg0: i32, %arg1: i32) -> (i32, i32, i32) {
    %c0_i32 = arith.constant 0 : i32
    %c0_i32_0 = arith.constant 0 : i32
    return %arg0, %arg1, %c0_i32 : i32, i32, i32
  }
  func.func @transform_3(%arg0: i32, %arg1: i32) -> (i32, i32, i32) {
    %c0_i32 = arith.constant 0 : i32
    %c0_i32_0 = arith.constant 0 : i32
    return %arg0, %arg1, %c0_i32 : i32, i32, i32
  }
  func.func @transform_4(%arg0: i32, %arg1: i32) -> (i32, i32) {
    %c0_i32 = arith.constant 0 : i32
    %c0_i32_0 = arith.constant 0 : i32
    return %arg0, %c0_i32 : i32, i32
  }
  func.func @transform_5(%arg0: i32, %arg1: i32) -> (i32, i32) {
    %c0_i32 = arith.constant 0 : i32
    %c0_i32_0 = arith.constant 0 : i32
    return %arg0, %c0_i32 : i32, i32
  }
  func.func @transform_6(%arg0: i32, %arg1: i32) -> (i32, i32) {
    %c0_i32 = arith.constant 0 : i32
    %c0_i32_0 = arith.constant 0 : i32
    %c0_i32_1 = arith.constant 0 : i32
    return %c0_i32, %c0_i32_0 : i32, i32
  }
  func.func @transform_7(%arg0: i32, %arg1: i32) -> (i32, i32) {
    %c0_i32 = arith.constant 0 : i32
    %c0_i32_0 = arith.constant 0 : i32
    %c0_i32_1 = arith.constant 0 : i32
    return %c0_i32, %c0_i32_0 : i32, i32
  }
  func.func @transform_8(%arg0: i32, %arg1: i32) -> (i32, i32) {
    %c0_i32 = arith.constant 0 : i32
    %c0_i32_0 = arith.constant 0 : i32
    %c0_i32_1 = arith.constant 0 : i32
    return %c0_i32, %c0_i32_0 : i32, i32
  }
  func.func @transform_9(%arg0: i32, %arg1: i32) -> i32 {
    %c0_i32 = arith.constant 0 : i32
    %c0_i32_0 = arith.constant 0 : i32
    return %c0_i32 : i32
  }
  func.func @transform_10(%arg0: i32, %arg1: i32) -> (i32, i32) {
    %c0_i32 = arith.constant 0 : i32
    %c0_i32_0 = arith.constant 0 : i32
    return %arg0, %c0_i32 : i32, i32
  }
}

</mosaic_0001>

<llo_original>
// kernel: tpu_custom_call.1
$region0: #{tpu_custom_call.1}
  #allocation0 [shape = 'u32[]', space=smem, size = 0x4, offset = 0x4, fixed_abs, tag = 'smem constant byte address 0x4 - core index']
  #allocation1 [shape = 'u32[72,128]{1,0:T(1,128)}', space=vmem, size = 0x9000, scoped, tag = 'internal scratch']
  #allocation2 [shape = 'f32[2,64]{1,0:T(2,128)}', space=vmem, size = 0x400, scoped, tag = 'scratch operand']
  #allocation3 [shape = 'f32[2,64]{1,0:T(2,128)}', space=vmem, size = 0x400, scoped, tag = 'scratch operand']
  %s0 = inlined_call_operand.vmem [shape: bf16[2,32,64], index: 0, kind: input, shape index: {}]
  %s1 = inlined_call_operand.vmem [shape: bf16[2,32,1], index: 1, kind: input, shape index: {}]
  %s2 = inlined_call_operand.vmem [shape: bf16[2,32,64], index: 2, kind: input, shape index: {}]
  %s3 = inlined_call_operand.vmem [shape: bf16[2,32,1], index: 3, kind: input, shape index: {}]
  %s4 = inlined_call_operand.vmem [shape: f32[2,64], index: 4, kind: input, shape index: {}]
  %s5 = inlined_call_operand.vmem [shape: f32[2,64], index: 5, kind: input, shape index: {}]
  %s6 = inlined_call_operand.vmem [shape: f32[64,32], index: 6, kind: input, shape index: {}]
  %s7 = inlined_call_operand.vmem [shape: f32[64,32], index: 7, kind: input, shape index: {}]
  %s8 = inlined_call_operand.vmem [shape: f32[8,32], index: 8, kind: input, shape index: {}]
  %s9 = inlined_call_operand.vmem [shape: f32[2], index: 9, kind: input, shape index: {}]
  %s10 = inlined_call_operand.hbm [shape: f32[2,128], index: 10, kind: output, shape index: {}]
  %s11 = sld [smem:[#allocation0]]
  $region249: #{tpu_custom_call.1} parent=0
    _
  %s13 = ssub.s32 1, %s11
  %s14 = scalar_select 0, %s13, %s11
  $region1: #{tpu_custom_call.1} parent=0
    #allocation4 [shape = 'u8[16384]{0}', space=vmem, size = 0x4000, scoped, tag = 'input window, operand 0']
    #allocation5 [shape = 'u8[16384]{0}', space=vmem, size = 0x4000, scoped, tag = 'input window, operand 1']
    #allocation6 [shape = 'u8[16384]{0}', space=vmem, size = 0x4000, scoped, tag = 'input window, operand 2']
    #allocation7 [shape = 'u8[16384]{0}', space=vmem, size = 0x4000, scoped, tag = 'input window, operand 3']
    #allocation8 [shape = 'u8[512]{0}', space=smem, size = 0x200, scoped, tag = 'input window, operand 9, single buffered']
    #allocation9 [shape = 's32[2]{0}', space=sflag, size = 0x8, scoped, tag = 'scoped memory for tpu_custom_call.1']
    #allocation10 [shape = 's32[2]{0}', space=sflag, size = 0x8, scoped, tag = 'scoped memory for tpu_custom_call.1']
    #allocation11 [shape = 'u8[1024]{0}', space=vmem, size = 0x400, scoped, tag = 'output window, operand 0, single buffered']
    %15 = vsyncpa [#allocation10], 0
    %16 = vsyncpa [#allocation9], 0
    loop: start=0, step=1, limit=4
    $region2: #{tpu_custom_call.1} parent=1 // loop_pre_header
      _
    $region3: #{tpu_custom_call.1} parent=1 // loop_header
      %s18 = sphi 0, %s22
      %p19 = scmp.ge.s32.totalorder %s18, 4
      %s25 = sphi 0, %s37
      %s26 = sphi 0, %s33
      %s27 = sphi 0, %s25
      %s28 = sphi 0, %s26
      %s29 = sphi 0, %s27
      %s30 = sphi 0, %s28
      %s42 = sphi 0, %s44
      %s45 = sphi 0, %s42
      %s46 = sphi 0, %s45
      %s62 = sphi 0, %s46
      %s70 = sphi 0, %s72
      %s73 = sphi 0, %s70
      %s74 = sphi 0, %s73
      %s90 = sphi 0, %s74
      %s98 = sphi 0, %s100
      %s101 = sphi 0, %s98
      %s102 = sphi 0, %s101
      %s118 = sphi 0, %s102
      %s126 = sphi 0, %s128
      %s129 = sphi 0, %s126
      %s130 = sphi 0, %s129
      %s146 = sphi 0, %s130
      %s152 = sphi 0, %s154
      %s155 = sphi 0, %s152
      %s156 = sphi 0, %s155
      %s172 = sphi 0, %s156
      %s178 = sphi 0, %s180
      %s181 = sphi 0, %s178
      %s182 = sphi 0, %s181
      %s198 = sphi 0, %s182
      %s202 = sphi 0, %s202
      %s204 = sphi 0, %s202
      %s205 = sphi 0, %s204
      %s219 = sphi 0, %s205
      %s223 = sphi 0, %s223
      %s225 = sphi 0, %s223
      %s226 = sphi 0, %s225
      %s240 = sphi 0, %s226
      %s244 = sphi 0, %s244
      %s246 = sphi 0, %s244
      %s247 = sphi 0, %s246
      %s261 = sphi 0, %s247
      %s265 = sphi 0, %s265
      %s267 = sphi 0, %s265
      %s268 = sphi 0, %s267
      %s282 = sphi 0, %s268
      %s288 = sphi 0, %s290
      %s291 = sphi 0, %s288
      %s292 = sphi 0, %s291
      %s308 = sphi 0, %s292
    $region4: #{tpu_custom_call.1} parent=1 // loop_header_branch
      %21 = sbr.rel (%p19) target = $region8
    $region5: #{tpu_custom_call.1} parent=1 // loop_body
      %s23 = ssub.s32 %s18, 1
      %s24 = ssub.s32 %s18, 2
      %s31 = sadd.s32 1, %s26
      %p32 = scmp.ge.s32.totalorder %s31, 2
      %s33 = scalar_select %p32, 0, %s31
      %s34 = sadd.s32 1, %s25
      %s35 = scalar_select %p32, %s34, %s25
      %p36 = scmp.ge.s32.totalorder %s35, 1
      %s37 = scalar_select %p36, 0, %s35
      %s38 = ssub.s32 %s25, %s37
      %s39 = ssub.s32 %s26, %s33
      %s40 = sor.u32 %s38, %s39
      %p41 = scmp.eq.s32.totalorder %s40, 0
      %s43 = sadd.s32 %s42, 1
      %s44 = scalar_select %p41, %s42, %s43
      %p47 = pneg %p41
      %p48 = scmp.eq.s32.totalorder %s18, 1
      %p49 = por %p47, %p48
      %p50 = scmp.ne.s32.totalorder %s42, %s45
      %p51 = scmp.eq.s32.totalorder %s18, 0
      %p52 = por %p50, %p51
      %p53 = scmp.ne.s32.totalorder %s42, %s45
      %p54 = scmp.eq.s32.totalorder %s23, 1
      %p55 = por %p53, %p54
      %p56 = scmp.ne.s32.totalorder %s45, %s46
      %p57 = scmp.eq.s32.totalorder %s23, 0
      %p58 = por %p56, %p57
      %p59 = scmp.ne.s32.totalorder %s45, %s46
      %p60 = scmp.eq.s32.totalorder %s24, 1
      %p61 = por %p59, %p60
      %p63 = scmp.ne.s32.totalorder %s46, %s62
      %p64 = scmp.eq.s32.totalorder %s24, 0
      %p65 = por %p63, %p64
      %s66 = ssub.s32 %s25, %s37
      %s67 = ssub.s32 %s26, %s33
      %s68 = sor.u32 %s66, %s67
      %p69 = scmp.eq.s32.totalorder %s68, 0
      %s71 = sadd.s32 %s70, 1
      %s72 = scalar_select %p69, %s70, %s71
      %p75 = pneg %p69
      %p76 = scmp.eq.s32.totalorder %s18, 1
      %p77 = por %p75, %p76
      %p78 = scmp.ne.s32.totalorder %s70, %s73
      %p79 = scmp.eq.s32.totalorder %s18, 0
      %p80 = por %p78, %p79
      %p81 = scmp.ne.s32.totalorder %s70, %s73
      %p82 = scmp.eq.s32.totalorder %s23, 1
      %p83 = por %p81, %p82
      %p84 = scmp.ne.s32.totalorder %s73, %s74
      %p85 = scmp.eq.s32.totalorder %s23, 0
      %p86 = por %p84, %p85
      %p87 = scmp.ne.s32.totalorder %s73, %s74
      %p88 = scmp.eq.s32.totalorder %s24, 1
      %p89 = por %p87, %p88
      %p91 = scmp.ne.s32.totalorder %s74, %s90
      %p92 = scmp.eq.s32.totalorder %s24, 0
      %p93 = por %p91, %p92
      %s94 = ssub.s32 %s25, %s37
      %s95 = ssub.s32 %s26, %s33
      %s96 = sor.u32 %s94, %s95
      %p97 = scmp.eq.s32.totalorder %s96, 0
      %s99 = sadd.s32 %s98, 1
      %s100 = scalar_select %p97, %s98, %s99
      %p103 = pneg %p97
      %p104 = scmp.eq.s32.totalorder %s18, 1
      %p105 = por %p103, %p104
      %p106 = scmp.ne.s32.totalorder %s98, %s101
      %p107 = scmp.eq.s32.totalorder %s18, 0
      %p108 = por %p106, %p107
      %p109 = scmp.ne.s32.totalorder %s98, %s101
      %p110 = scmp.eq.s32.totalorder %s23, 1
      %p111 = por %p109, %p110
      %p112 = scmp.ne.s32.totalorder %s101, %s102
      %p113 = scmp.eq.s32.totalorder %s23, 0
      %p114 = por %p112, %p113
      %p115 = scmp.ne.s32.totalorder %s101, %s102
      %p116 = scmp.eq.s32.totalorder %s24, 1
      %p117 = por %p115, %p116
      %p119 = scmp.ne.s32.totalorder %s102, %s118
      %p120 = scmp.eq.s32.totalorder %s24, 0
      %p121 = por %p119, %p120
      %s122 = ssub.s32 %s25, %s37
      %s123 = ssub.s32 %s26, %s33
      %s124 = sor.u32 %s122, %s123
      %p125 = scmp.eq.s32.totalorder %s124, 0
      %s127 = sadd.s32 %s126, 1
      %s128 = scalar_select %p125, %s126, %s127
      %p131 = pneg %p125
      %p132 = scmp.eq.s32.totalorder %s18, 1
      %p133 = por %p131, %p132
      %p134 = scmp.ne.s32.totalorder %s126, %s129
      %p135 = scmp.eq.s32.totalorder %s18, 0
      %p136 = por %p134, %p135
      %p137 = scmp.ne.s32.totalorder %s126, %s129
      %p138 = scmp.eq.s32.totalorder %s23, 1
      %p139 = por %p137, %p138
      %p140 = scmp.ne.s32.totalorder %s129, %s130
      %p141 = scmp.eq.s32.totalorder %s23, 0
      %p142 = por %p140, %p141
      %p143 = scmp.ne.s32.totalorder %s129, %s130
      %p144 = scmp.eq.s32.totalorder %s24, 1
      %p145 = por %p143, %p144
      %p147 = scmp.ne.s32.totalorder %s130, %s146
      %p148 = scmp.eq.s32.totalorder %s24, 0
      %p149 = por %p147, %p148
      %s150 = ssub.s32 %s25, %s37
      %p151 = scmp.eq.s32.totalorder %s150, 0
      %s153 = sadd.s32 %s152, 1
      %s154 = scalar_select %p151, %s152, %s153
      %p157 = pneg %p151
      %p158 = scmp.eq.s32.totalorder %s18, 1
      %p159 = por %p157, %p158
      %p160 = scmp.ne.s32.totalorder %s152, %s155
      %p161 = scmp.eq.s32.totalorder %s18, 0
      %p162 = por %p160, %p161
      %p163 = scmp.ne.s32.totalorder %s152, %s155
      %p164 = scmp.eq.s32.totalorder %s23, 1
      %p165 = por %p163, %p164
      %p166 = scmp.ne.s32.totalorder %s155, %s156
      %p167 = scmp.eq.s32.totalorder %s23, 0
      %p168 = por %p166, %p167
      %p169 = scmp.ne.s32.totalorder %s155, %s156
      %p170 = scmp.eq.s32.totalorder %s24, 1
      %p171 = por %p169, %p170
      %p173 = scmp.ne.s32.totalorder %s156, %s172
      %p174 = scmp.eq.s32.totalorder %s24, 0
      %p175 = por %p173, %p174
      %s176 = ssub.s32 %s25, %s37
      %p177 = scmp.eq.s32.totalorder %s176, 0
      %s179 = sadd.s32 %s178, 1
      %s180 = scalar_select %p177, %s178, %s179
      %p183 = pneg %p177
      %p184 = scmp.eq.s32.totalorder %s18, 1
      %p185 = por %p183, %p184
      %p186 = scmp.ne.s32.totalorder %s178, %s181
      %p187 = scmp.eq.s32.totalorder %s18, 0
      %p188 = por %p186, %p187
      %p189 = scmp.ne.s32.totalorder %s178, %s181
      %p190 = scmp.eq.s32.totalorder %s23, 1
      %p191 = por %p189, %p190
      %p192 = scmp.ne.s32.totalorder %s181, %s182
      %p193 = scmp.eq.s32.totalorder %s23, 0
      %p194 = por %p192, %p193
      %p195 = scmp.ne.s32.totalorder %s181, %s182
      %p196 = scmp.eq.s32.totalorder %s24, 1
      %p197 = por %p195, %p196
      %p199 = scmp.ne.s32.totalorder %s182, %s198
      %p200 = scmp.eq.s32.totalorder %s24, 0
      %p201 = por %p199, %p200
      %s203 = sadd.s32 %s202, 1
      %p206 = scmp.eq.s32.totalorder %s18, 1
      %p207 = scmp.ne.s32.totalorder %s202, %s204
      %p208 = scmp.eq.s32.totalorder %s18, 0
      %p209 = por %p207, %p208
      %p210 = scmp.ne.s32.totalorder %s202, %s204
      %p211 = scmp.eq.s32.totalorder %s23, 1
      %p212 = por %p210, %p211
      %p213 = scmp.ne.s32.totalorder %s204, %s205
      %p214 = scmp.eq.s32.totalorder %s23, 0
      %p215 = por %p213, %p214
      %p216 = scmp.ne.s32.totalorder %s204, %s205
      %p217 = scmp.eq.s32.totalorder %s24, 1
      %p218 = por %p216, %p217
      %p220 = scmp.ne.s32.totalorder %s205, %s219
      %p221 = scmp.eq.s32.totalorder %s24, 0
      %p222 = por %p220, %p221
      %s224 = sadd.s32 %s223, 1
      %p227 = scmp.eq.s32.totalorder %s18, 1
      %p228 = scmp.ne.s32.totalorder %s223, %s225
      %p229 = scmp.eq.s32.totalorder %s18, 0
      %p230 = por %p228, %p229
      %p231 = scmp.ne.s32.totalorder %s223, %s225
      %p232 = scmp.eq.s32.totalorder %s23, 1
      %p233 = por %p231, %p232
      %p234 = scmp.ne.s32.totalorder %s225, %s226
      %p235 = scmp.eq.s32.totalorder %s23, 0
      %p236 = por %p234, %p235
      %p237 = scmp.ne.s32.totalorder %s225, %s226
      %p238 = scmp.eq.s32.totalorder %s24, 1
      %p239 = por %p237, %p238
      %p241 = scmp.ne.s32.totalorder %s226, %s240
      %p242 = scmp.eq.s32.totalorder %s24, 0
      %p243 = por %p241, %p242
      %s245 = sadd.s32 %s244, 1
      %p248 = scmp.eq.s32.totalorder %s18, 1
      %p249 = scmp.ne.s32.totalorder %s244, %s246
      %p250 = scmp.eq.s32.totalorder %s18, 0
      %p251 = por %p249, %p250
      %p252 = scmp.ne.s32.totalorder %s244, %s246
      %p253 = scmp.eq.s32.totalorder %s23, 1
      %p254 = por %p252, %p253
      %p255 = scmp.ne.s32.totalorder %s246, %s247
      %p256 = scmp.eq.s32.totalorder %s23, 0
      %p257 = por %p255, %p256
      %p258 = scmp.ne.s32.totalorder %s246, %s247
      %p259 = scmp.eq.s32.totalorder %s24, 1
      %p260 = por %p258, %p259
      %p262 = scmp.ne.s32.totalorder %s247, %s261
      %p263 = scmp.eq.s32.totalorder %s24, 0
      %p264 = por %p262, %p263
      %s266 = sadd.s32 %s265, 1
      %p269 = scmp.eq.s32.totalorder %s18, 1
      %p270 = scmp.ne.s32.totalorder %s265, %s267
      %p271 = scmp.eq.s32.totalorder %s18, 0
      %p272 = por %p270, %p271
      %p273 = scmp.ne.s32.totalorder %s265, %s267
      %p274 = scmp.eq.s32.totalorder %s23, 1
      %p275 = por %p273, %p274
      %p276 = scmp.ne.s32.totalorder %s267, %s268
      %p277 = scmp.eq.s32.totalorder %s23, 0
      %p278 = por %p276, %p277
      %p279 = scmp.ne.s32.totalorder %s267, %s268
      %p280 = scmp.eq.s32.totalorder %s24, 1
      %p281 = por %p279, %p280
      %p283 = scmp.ne.s32.totalorder %s268, %s282
      %p284 = scmp.eq.s32.totalorder %s24, 0
      %p285 = por %p283, %p284
      %s286 = ssub.s32 %s25, %s37
      %p287 = scmp.eq.s32.totalorder %s286, 0
      %s289 = sadd.s32 %s288, 1
      %s290 = scalar_select %p287, %s288, %s289
      %p293 = pneg %p287
      %p294 = scmp.eq.s32.totalorder %s18, 1
      %p295 = por %p293, %p294
      %p296 = scmp.ne.s32.totalorder %s288, %s291
      %p297 = scmp.eq.s32.totalorder %s18, 0
      %p298 = por %p296, %p297
      %p299 = scmp.ne.s32.totalorder %s288, %s291
      %p300 = scmp.eq.s32.totalorder %s23, 1
      %p301 = por %p299, %p300
      %p302 = scmp.ne.s32.totalorder %s291, %s292
      %p303 = scmp.eq.s32.totalorder %s23, 0
      %p304 = por %p302, %p303
      %p305 = scmp.ne.s32.totalorder %s291, %s292
      %p306 = scmp.eq.s32.totalorder %s24, 1
      %p307 = por %p305, %p306
      %p309 = scmp.ne.s32.totalorder %s292, %s308
      %p310 = scmp.eq.s32.totalorder %s24, 0
      %p311 = por %p309, %p310
      %p312 = scmp.le.s32.totalorder 1, %s18
      %p313 = scmp.lt.s32.totalorder %s18, 3
      %p314 = pnand %p312, %p313
      %p315 = pneg %p314
      // Predicated region
      $region9: #{tpu_custom_call.1} parent=5 // pred_check
        _
      $region10: #{tpu_custom_call.1} parent=5 // pred_check_branch
        %317 = sbr.rel (%p314) target = $region12
      $region11: #{tpu_custom_call.1} parent=5 // pred_region
        %s318 = ssub.s32 %s18, 1
        // Predicated region
        $region13: #{tpu_custom_call.1} parent=11 // pred_check
          %p319 = pneg %p168
        $region14: #{tpu_custom_call.1} parent=11 // pred_check_branch
          %321 = sbr.rel (%p319) target = $region16
        $region15: #{tpu_custom_call.1} parent=11 // pred_region
          %p322 = scmp.lt.s32.totalorder %s27, 0
          %s323 = scalar_select %p322, %s27, 0
          %s324 = smul.addr %s323, 2
          %s325 = scalar_lea.vmem %s4, %s324
        $region16: #{tpu_custom_call.1} parent=11 // pred_fallthru
          _
        // Predicated region
        $region17: #{tpu_custom_call.1} parent=11 // pred_check
          %p326 = pneg %p194
        $region18: #{tpu_custom_call.1} parent=11 // pred_check_branch
          %328 = sbr.rel (%p326) target = $region20
        $region19: #{tpu_custom_call.1} parent=11 // pred_region
          %p329 = scmp.lt.s32.totalorder %s27, 0
          %s330 = scalar_select %p329, %s27, 0
          %s331 = smul.addr %s330, 2
          %s332 = scalar_lea.vmem %s5, %s331
        $region20: #{tpu_custom_call.1} parent=11 // pred_fallthru
          _
        // Predicated region
        $region21: #{tpu_custom_call.1} parent=11 // pred_check
          %p333 = pneg %p215
        $region22: #{tpu_custom_call.1} parent=11 // pred_check_branch
          %335 = sbr.rel (%p333) target = $region24
        $region23: #{tpu_custom_call.1} parent=11 // pred_region
          _
        $region24: #{tpu_custom_call.1} parent=11 // pred_fallthru
          _
        // Predicated region
        $region25: #{tpu_custom_call.1} parent=11 // pred_check
          %p336 = pneg %p236
        $region26: #{tpu_custom_call.1} parent=11 // pred_check_branch
          %338 = sbr.rel (%p336) target = $region28
        $region27: #{tpu_custom_call.1} parent=11 // pred_region
          _
        $region28: #{tpu_custom_call.1} parent=11 // pred_fallthru
          _
        // Predicated region
        $region29: #{tpu_custom_call.1} parent=11 // pred_check
          %p339 = pneg %p257
        $region30: #{tpu_custom_call.1} parent=11 // pred_check_branch
          %341 = sbr.rel (%p339) target = $region32
        $region31: #{tpu_custom_call.1} parent=11 // pred_region
          _
        $region32: #{tpu_custom_call.1} parent=11 // pred_fallthru
          _
        // Predicated region
        $region33: #{tpu_custom_call.1} parent=11 // pred_check
          %p342 = pneg %p278
        $region34: #{tpu_custom_call.1} parent=11 // pred_check_branch
          %344 = sbr.rel (%p342) target = $region36
        $region35: #{tpu_custom_call.1} parent=11 // pred_region
          %346 = vsyncadd [#allocation10], 0
          %s348 = sshll.u32 %s9, 4
          %s349 = int_to_ptr.vmem [resolvable:$true] %s348
          %351 = dma.vmem_to_smem %s349, 16, [#allocation8], [#allocation10]
        $region36: #{tpu_custom_call.1} parent=11 // pred_fallthru
          _
      $region12: #{tpu_custom_call.1} parent=5 // pred_fallthru
        _
      %p352 = scmp.lt.s32.totalorder %s18, 2
      // Predicated region
      $region37: #{tpu_custom_call.1} parent=5 // pred_check
        %p353 = pneg %p352
      $region38: #{tpu_custom_call.1} parent=5 // pred_check_branch
        %355 = sbr.rel (%p353) target = $region40
      $region39: #{tpu_custom_call.1} parent=5 // pred_region
        // Predicated region
        $region41: #{tpu_custom_call.1} parent=39 // pred_check
          %p356 = pneg %p52
        $region42: #{tpu_custom_call.1} parent=39 // pred_check_branch
          %358 = sbr.rel (%p356) target = $region44
        $region43: #{tpu_custom_call.1} parent=39 // pred_region
          %s359 = sand.u32 %s42, 1
          %s360 = sand.u32 %s42, 1
          %s361 = smul.addr %s360, 16
          %s362 = scalar_lea.vmem [#allocation4], %s361
          %s363 = smul.u32 2, %s25
          %s364 = smul.u32 2, %s26
          %s365 = smul.addr %s363, 4
          %s366 = sadd.s32 %s364, %s365
          %s367 = smul.addr %s366, 4
          %s368 = scalar_lea.vmem %s0, %s367
          // Predicated region
          $region45: #{tpu_custom_call.1} parent=43 // pred_check
            _
          $region46: #{tpu_custom_call.1} parent=43 // pred_check_branch
            %370 = sbr.rel (0) target = $region48
          $region47: #{tpu_custom_call.1} parent=43 // pred_region
            // Predicated region
            $region49: #{tpu_custom_call.1} parent=47 // pred_check
              _
            $region50: #{tpu_custom_call.1} parent=47 // pred_check_branch
              %372 = sbr.rel target = $region52
            $region51: #{tpu_custom_call.1} parent=47 // pred_region
              // Predicated region
              $region64: #{tpu_custom_call.1} parent=51 // pred_check
                _
              $region65: #{tpu_custom_call.1} parent=51 // pred_check_branch
                %394 = sbr.rel (0) target = $region67
              $region66: #{tpu_custom_call.1} parent=51 // pred_region
                loop: start=0, step=1, limit=1
                $region68: #{tpu_custom_call.1} parent=66 // loop_pre_header
                  _
                $region69: #{tpu_custom_call.1} parent=66 // loop_header
                  %s396 = sphi 0, %s400
                  %p397 = scmp.ge.s32.totalorder %s396, 1
                  %s401 = sphi %s368, %s368
                  %s402 = sphi %s362, %s362
                $region70: #{tpu_custom_call.1} parent=66 // loop_header_branch
                  %399 = sbr.rel (%p397) target = $region74
                $region71: #{tpu_custom_call.1} parent=66 // loop_body
                  _
                $region72: #{tpu_custom_call.1} parent=66 // loop_footer
                  %s400 = sadd.s32 1, %s396
                $region73: #{tpu_custom_call.1} parent=66 // loop_footer_branch
                  %395 = sbr.rel target = $region69
                $region74: #{tpu_custom_call.1} parent=66 // loop_exit
                  _
                %s404 = ssub.s32 16, 1
                loop: start=0, step=1, limit=1
                $region75: #{tpu_custom_call.1} parent=66 // loop_pre_header
                  _
                $region76: #{tpu_custom_call.1} parent=66 // loop_header
                  %s406 = sphi 0, %s410
                  %p407 = scmp.ge.s32.totalorder %s406, 1
                  %s411 = sphi %s368, %s368
                  %s412 = sphi %s362, %s362
                $region77: #{tpu_custom_call.1} parent=66 // loop_header_branch
                  %409 = sbr.rel (%p407) target = $region81
                $region78: #{tpu_custom_call.1} parent=66 // loop_body
                  %v413 = vld [vmem:[%s411] sm:%s404]
                  %414 = vst [vmem:[%s412] sm:%s404] %v413
                  %v415 = vld [vmem:[%s411 + $0x4] sm:%s404]
                  %416 = vst [vmem:[%s412 + $0x4] sm:%s404] %v415
                  %v417 = vld [vmem:[%s411 + $0x10] sm:%s404]
                  %418 = vst [vmem:[%s412 + $0x8] sm:%s404] %v417
                  %v419 = vld [vmem:[%s411 + $0x14] sm:%s404]
                  %420 = vst [vmem:[%s412 + $0xc] sm:%s404] %v419
                $region79: #{tpu_custom_call.1} parent=66 // loop_footer
                  %s410 = sadd.s32 1, %s406
                $region80: #{tpu_custom_call.1} parent=66 // loop_footer_branch
                  %405 = sbr.rel target = $region76
                $region81: #{tpu_custom_call.1} parent=66 // loop_exit
                  _
              $region67: #{tpu_custom_call.1} parent=51 // pred_fallthru
                _
            $region52: #{tpu_custom_call.1} parent=47 // pred_fallthru
              _
            // Predicated region
            $region53: #{tpu_custom_call.1} parent=47 // pred_check
              _
            $region54: #{tpu_custom_call.1} parent=47 // pred_check_branch
              %374 = sbr.rel (0) target = $region56
            $region55: #{tpu_custom_call.1} parent=47 // pred_region
              %s376 = ssub.s32 16, 1
              loop: start=0, step=1, limit=1
              $region57: #{tpu_custom_call.1} parent=55 // loop_pre_header
                _
              $region58: #{tpu_custom_call.1} parent=55 // loop_header
                %s378 = sphi 0, %s382
                %p379 = scmp.ge.s32.totalorder %s378, 1
                %s383 = sphi %s368, %s368
                %s384 = sphi %s362, %s362
              $region59: #{tpu_custom_call.1} parent=55 // loop_header_branch
                %381 = sbr.rel (%p379) target = $region63
              $region60: #{tpu_custom_call.1} parent=55 // loop_body
                %v385 = vld [vmem:[%s383] sm:%s376]
                %386 = vst [vmem:[%s384] sm:%s376] %v385
                %v387 = vld [vmem:[%s383 + $0x4] sm:%s376]
                %388 = vst [vmem:[%s384 + $0x4] sm:%s376] %v387
                %v389 = vld [vmem:[%s383 + $0x10] sm:%s376]
                %390 = vst [vmem:[%s384 + $0x8] sm:%s376] %v389
                %v391 = vld [vmem:[%s383 + $0x14] sm:%s376]
                %392 = vst [vmem:[%s384 + $0xc] sm:%s376] %v391
              $region61: #{tpu_custom_call.1} parent=55 // loop_footer
                %s382 = sadd.s32 1, %s378
              $region62: #{tpu_custom_call.1} parent=55 // loop_footer_branch
                %377 = sbr.rel target = $region58
              $region63: #{tpu_custom_call.1} parent=55 // loop_exit
                _
            $region56: #{tpu_custom_call.1} parent=47 // pred_fallthru
              _
          $region48: #{tpu_custom_call.1} parent=43 // pred_fallthru
            _
          %421 = vnop
        $region44: #{tpu_custom_call.1} parent=39 // pred_fallthru
          _
        // Predicated region
        $region82: #{tpu_custom_call.1} parent=39 // pred_check
          %p422 = pneg %p80
        $region83: #{tpu_custom_call.1} parent=39 // pred_check_branch
          %424 = sbr.rel (%p422) target = $region85
        $region84: #{tpu_custom_call.1} parent=39 // pred_region
          %s425 = sand.u32 %s70, 1
          %s426 = sand.u32 %s70, 1
          %s427 = smul.addr %s426, 16
          %s428 = scalar_lea.vmem [#allocation5], %s427
          %s429 = smul.u32 2, %s25
          %s430 = smul.u32 2, %s26
          %s431 = smul.addr %s429, 4
          %s432 = sadd.s32 %s430, %s431
          %s433 = smul.addr %s432, 4
          %s434 = scalar_lea.vmem %s1, %s433
          // Predicated region
          $region86: #{tpu_custom_call.1} parent=84 // pred_check
            _
          $region87: #{tpu_custom_call.1} parent=84 // pred_check_branch
            %436 = sbr.rel (0) target = $region89
          $region88: #{tpu_custom_call.1} parent=84 // pred_region
            // Predicated region
            $region90: #{tpu_custom_call.1} parent=88 // pred_check
              _
            $region91: #{tpu_custom_call.1} parent=88 // pred_check_branch
              %438 = sbr.rel target = $region93
            $region92: #{tpu_custom_call.1} parent=88 // pred_region
              // Predicated region
              $region105: #{tpu_custom_call.1} parent=92 // pred_check
                _
              $region106: #{tpu_custom_call.1} parent=92 // pred_check_branch
                %460 = sbr.rel (0) target = $region108
              $region107: #{tpu_custom_call.1} parent=92 // pred_region
                loop: start=0, step=1, limit=1
                $region109: #{tpu_custom_call.1} parent=107 // loop_pre_header
                  _
                $region110: #{tpu_custom_call.1} parent=107 // loop_header
                  %s462 = sphi 0, %s466
                  %p463 = scmp.ge.s32.totalorder %s462, 1
                  %s467 = sphi %s434, %s434
                  %s468 = sphi %s428, %s428
                $region111: #{tpu_custom_call.1} parent=107 // loop_header_branch
                  %465 = sbr.rel (%p463) target = $region115
                $region112: #{tpu_custom_call.1} parent=107 // loop_body
                  _
                $region113: #{tpu_custom_call.1} parent=107 // loop_footer
                  %s466 = sadd.s32 1, %s462
                $region114: #{tpu_custom_call.1} parent=107 // loop_footer_branch
                  %461 = sbr.rel target = $region110
                $region115: #{tpu_custom_call.1} parent=107 // loop_exit
                  _
                %s470 = ssub.s32 16, 1
                loop: start=0, step=1, limit=1
                $region116: #{tpu_custom_call.1} parent=107 // loop_pre_header
                  _
                $region117: #{tpu_custom_call.1} parent=107 // loop_header
                  %s472 = sphi 0, %s476
                  %p473 = scmp.ge.s32.totalorder %s472, 1
                  %s477 = sphi %s434, %s434
                  %s478 = sphi %s428, %s428
                $region118: #{tpu_custom_call.1} parent=107 // loop_header_branch
                  %475 = sbr.rel (%p473) target = $region122
                $region119: #{tpu_custom_call.1} parent=107 // loop_body
                  %v479 = vld [vmem:[%s477] sm:%s470]
                  %480 = vst [vmem:[%s478] sm:%s470] %v479
                  %v481 = vld [vmem:[%s477 + $0x4] sm:%s470]
                  %482 = vst [vmem:[%s478 + $0x4] sm:%s470] %v481
                  %v483 = vld [vmem:[%s477 + $0x10] sm:%s470]
                  %484 = vst [vmem:[%s478 + $0x8] sm:%s470] %v483
                  %v485 = vld [vmem:[%s477 + $0x14] sm:%s470]
                  %486 = vst [vmem:[%s478 + $0xc] sm:%s470] %v485
                $region120: #{tpu_custom_call.1} parent=107 // loop_footer
                  %s476 = sadd.s32 1, %s472
                $region121: #{tpu_custom_call.1} parent=107 // loop_footer_branch
                  %471 = sbr.rel target = $region117
                $region122: #{tpu_custom_call.1} parent=107 // loop_exit
                  _
              $region108: #{tpu_custom_call.1} parent=92 // pred_fallthru
                _
            $region93: #{tpu_custom_call.1} parent=88 // pred_fallthru
              _
            // Predicated region
            $region94: #{tpu_custom_call.1} parent=88 // pred_check
              _
            $region95: #{tpu_custom_call.1} parent=88 // pred_check_branch
              %440 = sbr.rel (0) target = $region97
            $region96: #{tpu_custom_call.1} parent=88 // pred_region
              %s442 = ssub.s32 16, 1
              loop: start=0, step=1, limit=1
              $region98: #{tpu_custom_call.1} parent=96 // loop_pre_header
                _
              $region99: #{tpu_custom_call.1} parent=96 // loop_header
                %s444 = sphi 0, %s448
                %p445 = scmp.ge.s32.totalorder %s444, 1
                %s449 = sphi %s434, %s434
                %s450 = sphi %s428, %s428
              $region100: #{tpu_custom_call.1} parent=96 // loop_header_branch
                %447 = sbr.rel (%p445) target = $region104
              $region101: #{tpu_custom_call.1} parent=96 // loop_body
                %v451 = vld [vmem:[%s449] sm:%s442]
                %452 = vst [vmem:[%s450] sm:%s442] %v451
                %v453 = vld [vmem:[%s449 + $0x4] sm:%s442]
                %454 = vst [vmem:[%s450 + $0x4] sm:%s442] %v453
                %v455 = vld [vmem:[%s449 + $0x10] sm:%s442]
                %456 = vst [vmem:[%s450 + $0x8] sm:%s442] %v455
                %v457 = vld [vmem:[%s449 + $0x14] sm:%s442]
                %458 = vst [vmem:[%s450 + $0xc] sm:%s442] %v457
              $region102: #{tpu_custom_call.1} parent=96 // loop_footer
                %s448 = sadd.s32 1, %s444
              $region103: #{tpu_custom_call.1} parent=96 // loop_footer_branch
                %443 = sbr.rel target = $region99
              $region104: #{tpu_custom_call.1} parent=96 // loop_exit
                _
            $region97: #{tpu_custom_call.1} parent=88 // pred_fallthru
              _
          $region89: #{tpu_custom_call.1} parent=84 // pred_fallthru
            _
          %487 = vnop
        $region85: #{tpu_custom_call.1} parent=39 // pred_fallthru
          _
        // Predicated region
        $region123: #{tpu_custom_call.1} parent=39 // pred_check
          %p488 = pneg %p108
        $region124: #{tpu_custom_call.1} parent=39 // pred_check_branch
          %490 = sbr.rel (%p488) target = $region126
        $region125: #{tpu_custom_call.1} parent=39 // pred_region
          %s491 = sand.u32 %s98, 1
          %s492 = sand.u32 %s98, 1
          %s493 = smul.addr %s492, 16
          %s494 = scalar_lea.vmem [#allocation6], %s493
          %s495 = smul.u32 2, %s25
          %s496 = smul.u32 2, %s26
          %s497 = smul.addr %s495, 4
          %s498 = sadd.s32 %s496, %s497
          %s499 = smul.addr %s498, 4
          %s500 = scalar_lea.vmem %s2, %s499
          // Predicated region
          $region127: #{tpu_custom_call.1} parent=125 // pred_check
            _
          $region128: #{tpu_custom_call.1} parent=125 // pred_check_branch
            %502 = sbr.rel (0) target = $region130
          $region129: #{tpu_custom_call.1} parent=125 // pred_region
            // Predicated region
            $region131: #{tpu_custom_call.1} parent=129 // pred_check
              _
            $region132: #{tpu_custom_call.1} parent=129 // pred_check_branch
              %504 = sbr.rel target = $region134
            $region133: #{tpu_custom_call.1} parent=129 // pred_region
              // Predicated region
              $region146: #{tpu_custom_call.1} parent=133 // pred_check
                _
              $region147: #{tpu_custom_call.1} parent=133 // pred_check_branch
                %526 = sbr.rel (0) target = $region149
              $region148: #{tpu_custom_call.1} parent=133 // pred_region
                loop: start=0, step=1, limit=1
                $region150: #{tpu_custom_call.1} parent=148 // loop_pre_header
                  _
                $region151: #{tpu_custom_call.1} parent=148 // loop_header
                  %s528 = sphi 0, %s532
                  %p529 = scmp.ge.s32.totalorder %s528, 1
                  %s533 = sphi %s500, %s500
                  %s534 = sphi %s494, %s494
                $region152: #{tpu_custom_call.1} parent=148 // loop_header_branch
                  %531 = sbr.rel (%p529) target = $region156
                $region153: #{tpu_custom_call.1} parent=148 // loop_body
                  _
                $region154: #{tpu_custom_call.1} parent=148 // loop_footer
                  %s532 = sadd.s32 1, %s528
                $region155: #{tpu_custom_call.1} parent=148 // loop_footer_branch
                  %527 = sbr.rel target = $region151
                $region156: #{tpu_custom_call.1} parent=148 // loop_exit
                  _
                %s536 = ssub.s32 16, 1
                loop: start=0, step=1, limit=1
                $region157: #{tpu_custom_call.1} parent=148 // loop_pre_header
                  _
                $region158: #{tpu_custom_call.1} parent=148 // loop_header
                  %s538 = sphi 0, %s542
                  %p539 = scmp.ge.s32.totalorder %s538, 1
                  %s543 = sphi %s500, %s500
                  %s544 = sphi %s494, %s494
                $region159: #{tpu_custom_call.1} parent=148 // loop_header_branch
                  %541 = sbr.rel (%p539) target = $region163
                $region160: #{tpu_custom_call.1} parent=148 // loop_body
                  %v545 = vld [vmem:[%s543] sm:%s536]
                  %546 = vst [vmem:[%s544] sm:%s536] %v545
                  %v547 = vld [vmem:[%s543 + $0x4] sm:%s536]
                  %548 = vst [vmem:[%s544 + $0x4] sm:%s536] %v547
                  %v549 = vld [vmem:[%s543 + $0x10] sm:%s536]
                  %550 = vst [vmem:[%s544 + $0x8] sm:%s536] %v549
                  %v551 = vld [vmem:[%s543 + $0x14] sm:%s536]
                  %552 = vst [vmem:[%s544 + $0xc] sm:%s536] %v551
                $region161: #{tpu_custom_call.1} parent=148 // loop_footer
                  %s542 = sadd.s32 1, %s538
                $region162: #{tpu_custom_call.1} parent=148 // loop_footer_branch
                  %537 = sbr.rel target = $region158
                $region163: #{tpu_custom_call.1} parent=148 // loop_exit
                  _
              $region149: #{tpu_custom_call.1} parent=133 // pred_fallthru
                _
            $region134: #{tpu_custom_call.1} parent=129 // pred_fallthru
              _
            // Predicated region
            $region135: #{tpu_custom_call.1} parent=129 // pred_check
              _
            $region136: #{tpu_custom_call.1} parent=129 // pred_check_branch
              %506 = sbr.rel (0) target = $region138
            $region137: #{tpu_custom_call.1} parent=129 // pred_region
              %s508 = ssub.s32 16, 1
              loop: start=0, step=1, limit=1
              $region139: #{tpu_custom_call.1} parent=137 // loop_pre_header
                _
              $region140: #{tpu_custom_call.1} parent=137 // loop_header
                %s510 = sphi 0, %s514
                %p511 = scmp.ge.s32.totalorder %s510, 1
                %s515 = sphi %s500, %s500
                %s516 = sphi %s494, %s494
              $region141: #{tpu_custom_call.1} parent=137 // loop_header_branch
                %513 = sbr.rel (%p511) target = $region145
              $region142: #{tpu_custom_call.1} parent=137 // loop_body
                %v517 = vld [vmem:[%s515] sm:%s508]
                %518 = vst [vmem:[%s516] sm:%s508] %v517
                %v519 = vld [vmem:[%s515 + $0x4] sm:%s508]
                %520 = vst [vmem:[%s516 + $0x4] sm:%s508] %v519
                %v521 = vld [vmem:[%s515 + $0x10] sm:%s508]
                %522 = vst [vmem:[%s516 + $0x8] sm:%s508] %v521
                %v523 = vld [vmem:[%s515 + $0x14] sm:%s508]
                %524 = vst [vmem:[%s516 + $0xc] sm:%s508] %v523
              $region143: #{tpu_custom_call.1} parent=137 // loop_footer
                %s514 = sadd.s32 1, %s510
              $region144: #{tpu_custom_call.1} parent=137 // loop_footer_branch
                %509 = sbr.rel target = $region140
              $region145: #{tpu_custom_call.1} parent=137 // loop_exit
                _
            $region138: #{tpu_custom_call.1} parent=129 // pred_fallthru
              _
          $region130: #{tpu_custom_call.1} parent=125 // pred_fallthru
            _
          %553 = vnop
        $region126: #{tpu_custom_call.1} parent=39 // pred_fallthru
          _
        // Predicated region
        $region164: #{tpu_custom_call.1} parent=39 // pred_check
          %p554 = pneg %p136
        $region165: #{tpu_custom_call.1} parent=39 // pred_check_branch
          %556 = sbr.rel (%p554) target = $region167
        $region166: #{tpu_custom_call.1} parent=39 // pred_region
          %s557 = sand.u32 %s126, 1
          %s558 = sand.u32 %s126, 1
          %s559 = smul.addr %s558, 16
          %s560 = scalar_lea.vmem [#allocation7], %s559
          %s561 = smul.u32 2, %s25
          %s562 = smul.u32 2, %s26
          %s563 = smul.addr %s561, 4
          %s564 = sadd.s32 %s562, %s563
          %s565 = smul.addr %s564, 4
          %s566 = scalar_lea.vmem %s3, %s565
          // Predicated region
          $region168: #{tpu_custom_call.1} parent=166 // pred_check
            _
          $region169: #{tpu_custom_call.1} parent=166 // pred_check_branch
            %568 = sbr.rel (0) target = $region171
          $region170: #{tpu_custom_call.1} parent=166 // pred_region
            // Predicated region
            $region172: #{tpu_custom_call.1} parent=170 // pred_check
              _
            $region173: #{tpu_custom_call.1} parent=170 // pred_check_branch
              %570 = sbr.rel target = $region175
            $region174: #{tpu_custom_call.1} parent=170 // pred_region
              // Predicated region
              $region187: #{tpu_custom_call.1} parent=174 // pred_check
                _
              $region188: #{tpu_custom_call.1} parent=174 // pred_check_branch
                %592 = sbr.rel (0) target = $region190
              $region189: #{tpu_custom_call.1} parent=174 // pred_region
                loop: start=0, step=1, limit=1
                $region191: #{tpu_custom_call.1} parent=189 // loop_pre_header
                  _
                $region192: #{tpu_custom_call.1} parent=189 // loop_header
                  %s594 = sphi 0, %s598
                  %p595 = scmp.ge.s32.totalorder %s594, 1
                  %s599 = sphi %s566, %s566
                  %s600 = sphi %s560, %s560
                $region193: #{tpu_custom_call.1} parent=189 // loop_header_branch
                  %597 = sbr.rel (%p595) target = $region197
                $region194: #{tpu_custom_call.1} parent=189 // loop_body
                  _
                $region195: #{tpu_custom_call.1} parent=189 // loop_footer
                  %s598 = sadd.s32 1, %s594
                $region196: #{tpu_custom_call.1} parent=189 // loop_footer_branch
                  %593 = sbr.rel target = $region192
                $region197: #{tpu_custom_call.1} parent=189 // loop_exit
                  _
                %s602 = ssub.s32 16, 1
                loop: start=0, step=1, limit=1
                $region198: #{tpu_custom_call.1} parent=189 // loop_pre_header
                  _
                $region199: #{tpu_custom_call.1} parent=189 // loop_header
                  %s604 = sphi 0, %s608
                  %p605 = scmp.ge.s32.totalorder %s604, 1
                  %s609 = sphi %s566, %s566
                  %s610 = sphi %s560, %s560
                $region200: #{tpu_custom_call.1} parent=189 // loop_header_branch
                  %607 = sbr.rel (%p605) target = $region204
                $region201: #{tpu_custom_call.1} parent=189 // loop_body
                  %v611 = vld [vmem:[%s609] sm:%s602]
                  %612 = vst [vmem:[%s610] sm:%s602] %v611
                  %v613 = vld [vmem:[%s609 + $0x4] sm:%s602]
                  %614 = vst [vmem:[%s610 + $0x4] sm:%s602] %v613
                  %v615 = vld [vmem:[%s609 + $0x10] sm:%s602]
                  %616 = vst [vmem:[%s610 + $0x8] sm:%s602] %v615
                  %v617 = vld [vmem:[%s609 + $0x14] sm:%s602]
                  %618 = vst [vmem:[%s610 + $0xc] sm:%s602] %v617
                $region202: #{tpu_custom_call.1} parent=189 // loop_footer
                  %s608 = sadd.s32 1, %s604
                $region203: #{tpu_custom_call.1} parent=189 // loop_footer_branch
                  %603 = sbr.rel target = $region199
                $region204: #{tpu_custom_call.1} parent=189 // loop_exit
                  _
              $region190: #{tpu_custom_call.1} parent=174 // pred_fallthru
                _
            $region175: #{tpu_custom_call.1} parent=170 // pred_fallthru
              _
            // Predicated region
            $region176: #{tpu_custom_call.1} parent=170 // pred_check
              _
            $region177: #{tpu_custom_call.1} parent=170 // pred_check_branch
              %572 = sbr.rel (0) target = $region179
            $region178: #{tpu_custom_call.1} parent=170 // pred_region
              %s574 = ssub.s32 16, 1
              loop: start=0, step=1, limit=1
              $region180: #{tpu_custom_call.1} parent=178 // loop_pre_header
                _
              $region181: #{tpu_custom_call.1} parent=178 // loop_header
                %s576 = sphi 0, %s580
                %p577 = scmp.ge.s32.totalorder %s576, 1
                %s581 = sphi %s566, %s566
                %s582 = sphi %s560, %s560
              $region182: #{tpu_custom_call.1} parent=178 // loop_header_branch
                %579 = sbr.rel (%p577) target = $region186
              $region183: #{tpu_custom_call.1} parent=178 // loop_body
                %v583 = vld [vmem:[%s581] sm:%s574]
                %584 = vst [vmem:[%s582] sm:%s574] %v583
                %v585 = vld [vmem:[%s581 + $0x4] sm:%s574]
                %586 = vst [vmem:[%s582 + $0x4] sm:%s574] %v585
                %v587 = vld [vmem:[%s581 + $0x10] sm:%s574]
                %588 = vst [vmem:[%s582 + $0x8] sm:%s574] %v587
                %v589 = vld [vmem:[%s581 + $0x14] sm:%s574]
                %590 = vst [vmem:[%s582 + $0xc] sm:%s574] %v589
              $region184: #{tpu_custom_call.1} parent=178 // loop_footer
                %s580 = sadd.s32 1, %s576
              $region185: #{tpu_custom_call.1} parent=178 // loop_footer_branch
                %575 = sbr.rel target = $region181
              $region186: #{tpu_custom_call.1} parent=178 // loop_exit
                _
            $region179: #{tpu_custom_call.1} parent=170 // pred_fallthru
              _
          $region171: #{tpu_custom_call.1} parent=166 // pred_fallthru
            _
          %619 = vnop
        $region167: #{tpu_custom_call.1} parent=39 // pred_fallthru
          _
      $region40: #{tpu_custom_call.1} parent=5 // pred_fallthru
        _
      %p620 = scmp.le.s32.totalorder 1, %s18
      %p621 = scmp.lt.s32.totalorder %s18, 3
      %p622 = pnand %p620, %p621
      %p623 = pneg %p622
      // Predicated region
      $region205: #{tpu_custom_call.1} parent=5 // pred_check
        _
      $region206: #{tpu_custom_call.1} parent=5 // pred_check_branch
        %625 = sbr.rel (%p622) target = $region208
      $region207: #{tpu_custom_call.1} parent=5 // pred_region
        %s626 = ssub.s32 %s18, 1
        %s627 = sand.u32 %s45, 1
        %s628 = sand.u32 %s45, 1
        %s629 = smul.addr %s628, 16
        %s630 = scalar_lea.vmem [#allocation4], %s629
        // Predicated region
        $region209: #{tpu_custom_call.1} parent=207 // pred_check
          %p631 = pneg %p58
        $region210: #{tpu_custom_call.1} parent=207 // pred_check_branch
          %633 = sbr.rel (%p631) target = $region212
        $region211: #{tpu_custom_call.1} parent=207 // pred_region
          _
        $region212: #{tpu_custom_call.1} parent=207 // pred_fallthru
          _
        %s634 = sand.u32 %s73, 1
        %s635 = sand.u32 %s73, 1
        %s636 = smul.addr %s635, 16
        %s637 = scalar_lea.vmem [#allocation5], %s636
        // Predicated region
        $region213: #{tpu_custom_call.1} parent=207 // pred_check
          %p638 = pneg %p86
        $region214: #{tpu_custom_call.1} parent=207 // pred_check_branch
          %640 = sbr.rel (%p638) target = $region216
        $region215: #{tpu_custom_call.1} parent=207 // pred_region
          _
        $region216: #{tpu_custom_call.1} parent=207 // pred_fallthru
          _
        %s641 = sand.u32 %s101, 1
        %s642 = sand.u32 %s101, 1
        %s643 = smul.addr %s642, 16
        %s644 = scalar_lea.vmem [#allocation6], %s643
        // Predicated region
        $region217: #{tpu_custom_call.1} parent=207 // pred_check
          %p645 = pneg %p114
        $region218: #{tpu_custom_call.1} parent=207 // pred_check_branch
          %647 = sbr.rel (%p645) target = $region220
        $region219: #{tpu_custom_call.1} parent=207 // pred_region
          _
        $region220: #{tpu_custom_call.1} parent=207 // pred_fallthru
          _
        %s648 = sand.u32 %s129, 1
        %s649 = sand.u32 %s129, 1
        %s650 = smul.addr %s649, 16
        %s651 = scalar_lea.vmem [#allocation7], %s650
        // Predicated region
        $region221: #{tpu_custom_call.1} parent=207 // pred_check
          %p652 = pneg %p142
        $region222: #{tpu_custom_call.1} parent=207 // pred_check_branch
          %654 = sbr.rel (%p652) target = $region224
        $region223: #{tpu_custom_call.1} parent=207 // pred_region
          _
        $region224: #{tpu_custom_call.1} parent=207 // pred_fallthru
          _
        // Predicated region
        $region225: #{tpu_custom_call.1} parent=207 // pred_check
          %p655 = pneg %p278
        $region226: #{tpu_custom_call.1} parent=207 // pred_check_branch
          %657 = sbr.rel (%p655) target = $region228
        $region227: #{tpu_custom_call.1} parent=207 // pred_region
          %659 = dma.done [#allocation10], 16
        $region228: #{tpu_custom_call.1} parent=207 // pred_fallthru
          _
        %660 = sfence
        %s661 = sand.u32 %s45, 1
        %s662 = sand.u32 %s45, 1
        %s663 = smul.addr %s662, 16
        %s664 = scalar_lea.vmem [#allocation4], %s663
        %p665 = pneg %p58
        %p666 = pneg %p55
        %s667 = sand.u32 %s73, 1
        %s668 = sand.u32 %s73, 1
        %s669 = smul.addr %s668, 16
        %s670 = scalar_lea.vmem [#allocation5], %s669
        %p671 = pneg %p86
        %p672 = pneg %p83
        %s673 = sand.u32 %s101, 1
        %s674 = sand.u32 %s101, 1
        %s675 = smul.addr %s674, 16
        %s676 = scalar_lea.vmem [#allocation6], %s675
        %p677 = pneg %p114
        %p678 = pneg %p111
        %s679 = sand.u32 %s129, 1
        %s680 = sand.u32 %s129, 1
        %s681 = smul.addr %s680, 16
        %s682 = scalar_lea.vmem [#allocation7], %s681
        %p683 = pneg %p142
        %p684 = pneg %p139
        %p685 = scmp.lt.s32.totalorder %s27, 0
        %s686 = scalar_select %p685, %s27, 0
        %s687 = smul.addr %s686, 2
        %s688 = scalar_lea.vmem %s4, %s687
        %p689 = pneg %p168
        %p690 = pneg %p165
        %p691 = scmp.lt.s32.totalorder %s27, 0
        %s692 = scalar_select %p691, %s27, 0
        %s693 = smul.addr %s692, 2
        %s694 = scalar_lea.vmem %s5, %s693
        %p695 = pneg %p194
        %p696 = pneg %p191
        %p697 = pneg %p215
        %p698 = pneg %p212
        %p699 = pneg %p236
        %p700 = pneg %p233
        %p701 = pneg %p257
        %p702 = pneg %p254
        %p703 = pneg %p278
        %p704 = pneg %p275
        %p705 = pneg %p304
        %p706 = pneg %p301
        %s707 = smul.u32 2, %s27
        %s708 = smul.u32 2, %s28
        %s709 = smul.u32 2, %s27
        %s710 = smul.u32 2, %s28
        %s711 = smul.u32 2, %s27
        %s712 = smul.u32 2, %s28
        %s713 = smul.u32 2, %s27
        %s714 = smul.u32 2, %s28
        %p715 = scmp.lt.s32.totalorder %s27, 0
        %s716 = scalar_select %p715, %s27, 0
        %s717 = smul.addr %s716, 2
        %s718 = scalar_lea.vmem %s4, %s717
        %p719 = scmp.lt.s32.totalorder %s27, 0
        %s720 = scalar_select %p719, %s27, 0
        %s721 = smul.addr %s720, 2
        %s722 = scalar_lea.vmem %s5, %s721
        %p723 = scmp.eq.s32.totalorder %s28, 0
        // Predicated region
        $region229: #{tpu_custom_call.1} parent=207 // pred_check
          %p724 = pneg %p723
        $region230: #{tpu_custom_call.1} parent=207 // pred_check_branch
          %726 = sbr.rel (%p724) target = $region232
        $region231: #{tpu_custom_call.1} parent=207 // pred_region
          %vm727 = vcmask 517120
          %728 = vst.msk [vmem:[#allocation2] sm:$0x3] %vm727, -inf
          %729 = vst.msk [vmem:[#allocation3] sm:$0x3] %vm727, -inf
        $region232: #{tpu_custom_call.1} parent=207 // pred_fallthru
          _
        %v730 = vld [vmem:[%s630] sm:$0xf]
        %v731 = vld [vmem:[%s630 + $0x4] sm:$0xf]
        %v732 = vld [vmem:[%s630 + $0x8] sm:$0xf]
        %v733 = vld [vmem:[%s630 + $0xc] sm:$0xf]
        %v734 = vld [vmem:[%s637] sm:$0xf]
        %v735 = vld [vmem:[%s637 + $0x4] sm:$0xf]
        %v736 = vld [vmem:[%s637 + $0x8] sm:$0xf]
        %v737 = vld [vmem:[%s637 + $0xc] sm:$0xf]
        %739 = vset.pattern.permute.xlu0 0
        %740 = vperm.xlu0 %739, %v734
        %v741 = vpop.permute.xlu0 %740
        %v744 = vunpack.c.l.s4 839922192
        %v745 = vunpack.c.0.s8 %v744
        %v746 = vperm.slane %v741, %v745
        %748 = vset.pattern.permute.xlu0 0
        %749 = vperm.xlu0 %748, %v735
        %v750 = vpop.permute.xlu0 %749
        %v753 = vunpack.c.l.s4 839922192
        %v754 = vunpack.c.0.s8 %v753
        %v755 = vperm.slane %v750, %v754
        %757 = vset.pattern.permute.xlu0 0
        %758 = vperm.xlu0 %757, %v736
        %v759 = vpop.permute.xlu0 %758
        %v762 = vunpack.c.l.s4 839922192
        %v763 = vunpack.c.0.s8 %v762
        %v764 = vperm.slane %v759, %v763
        %766 = vset.pattern.permute.xlu0 0
        %767 = vperm.xlu0 %766, %v737
        %v768 = vpop.permute.xlu0 %767
        %v771 = vunpack.c.l.s4 839922192
        %v772 = vunpack.c.0.s8 %v771
        %v773 = vperm.slane %v768, %v772
        %v774 = vunpack.c.l.bf16 %v730
        %v775 = vunpack.c.l.bf16 %v731
        %v776 = vunpack.c.l.bf16 %v732
        %v777 = vunpack.c.l.bf16 %v733
        %v778 = vunpack.c.l.bf16 %v746
        %v779 = vunpack.c.l.bf16 %v755
        %v780 = vunpack.c.l.bf16 %v764
        %v781 = vunpack.c.l.bf16 %v773
        %v782 = vmul.f32 %v774, %v778
        %v783 = vmul.f32 %v775, %v779
        %v784 = vmul.f32 %v776, %v780
        %v785 = vmul.f32 %v777, %v781
        %v786 = vpack.c.bf16 %v783, %v782
        %v787 = vpack.c.bf16 %v785, %v784
        %v788 = vunpack.c.l.bf16 %v786
        %v789 = vunpack.c.h.bf16 %v786
        %v790 = vunpack.c.l.bf16 %v787
        %v791 = vunpack.c.h.bf16 %v787
        %vm792 = vcmask 523264
        %v793 = vsel %vm792, %v788, -inf
        %v794 = vsel %vm792, %v789, -inf
        %v795 = vmax.f32 %v793, %v794
        %v796 = vrot.slane %v795, 4
        %v797 = vmax.f32 %v795, %v796
        %v798 = vrot.slane %v797, 2
        %v799 = vmax.f32 %v797, %v798
        %v800 = vrot.slane %v799, 1
        %v801 = vmax.f32 %v799, %v800
        %v802 = vsel %vm792, %v790, -inf
        %v803 = vsel %vm792, %v791, -inf
        %v804 = vmax.f32 %v802, %v803
        %v805 = vrot.slane %v804, 4
        %v806 = vmax.f32 %v804, %v805
        %v807 = vrot.slane %v806, 2
        %v808 = vmax.f32 %v806, %v807
        %v809 = vrot.slane %v808, 1
        %v810 = vmax.f32 %v808, %v809
        %v811 = vpack.c.bf16 %v801, %v801
        %v812 = vpack.c.bf16 %v810, %v810
        %v813 = vunpack.c.l.bf16 %v811
        %v814 = vunpack.c.l.bf16 %v812
        %v815 = vld [vmem:[%s644] sm:$0xf]
        %v816 = vld [vmem:[%s644 + $0x4] sm:$0xf]
        %v817 = vld [vmem:[%s644 + $0x8] sm:$0xf]
        %v818 = vld [vmem:[%s644 + $0xc] sm:$0xf]
        %v819 = vld [vmem:[%s651] sm:$0xf]
        %v820 = vld [vmem:[%s651 + $0x4] sm:$0xf]
        %v821 = vld [vmem:[%s651 + $0x8] sm:$0xf]
        %v822 = vld [vmem:[%s651 + $0xc] sm:$0xf]
        %824 = vset.pattern.permute.xlu0 0
        %825 = vperm.xlu0 %824, %v819
        %v826 = vpop.permute.xlu0 %825
        %v829 = vunpack.c.l.s4 839922192
        %v830 = vunpack.c.0.s8 %v829
        %v831 = vperm.slane %v826, %v830
        %833 = vset.pattern.permute.xlu0 0
        %834 = vperm.xlu0 %833, %v820
        %v835 = vpop.permute.xlu0 %834
        %v838 = vunpack.c.l.s4 839922192
        %v839 = vunpack.c.0.s8 %v838
        %v840 = vperm.slane %v835, %v839
        %842 = vset.pattern.permute.xlu0 0
        %843 = vperm.xlu0 %842, %v821
        %v844 = vpop.permute.xlu0 %843
        %v847 = vunpack.c.l.s4 839922192
        %v848 = vunpack.c.0.s8 %v847
        %v849 = vperm.slane %v844, %v848
        %851 = vset.pattern.permute.xlu0 0
        %852 = vperm.xlu0 %851, %v822
        %v853 = vpop.permute.xlu0 %852
        %v856 = vunpack.c.l.s4 839922192
        %v857 = vunpack.c.0.s8 %v856
        %v858 = vperm.slane %v853, %v857
        %v859 = vunpack.c.l.bf16 %v815
        %v860 = vunpack.c.l.bf16 %v816
        %v861 = vunpack.c.l.bf16 %v817
        %v862 = vunpack.c.l.bf16 %v818
        %v863 = vunpack.c.l.bf16 %v831
        %v864 = vunpack.c.l.bf16 %v840
        %v865 = vunpack.c.l.bf16 %v849
        %v866 = vunpack.c.l.bf16 %v858
        %v867 = vmul.f32 %v859, %v863
        %v868 = vmul.f32 %v860, %v864
        %v869 = vmul.f32 %v861, %v865
        %v870 = vmul.f32 %v862, %v866
        %v871 = vpack.c.bf16 %v868, %v867
        %v872 = vpack.c.bf16 %v870, %v869
        %v873 = vunpack.c.l.bf16 %v871
        %v874 = vunpack.c.h.bf16 %v871
        %v875 = vunpack.c.l.bf16 %v872
        %v876 = vunpack.c.h.bf16 %v872
        %v877 = vsel %vm792, %v873, -inf
        %v878 = vsel %vm792, %v874, -inf
        %v879 = vmax.f32 %v877, %v878
        %v880 = vrot.slane %v879, 4
        %v881 = vmax.f32 %v879, %v880
        %v882 = vrot.slane %v881, 2
        %v883 = vmax.f32 %v881, %v882
        %v884 = vrot.slane %v883, 1
        %v885 = vmax.f32 %v883, %v884
        %v886 = vsel %vm792, %v875, -inf
        %v887 = vsel %vm792, %v876, -inf
        %v888 = vmax.f32 %v886, %v887
        %v889 = vrot.slane %v888, 4
        %v890 = vmax.f32 %v888, %v889
        %v891 = vrot.slane %v890, 2
        %v892 = vmax.f32 %v890, %v891
        %v893 = vrot.slane %v892, 1
        %v894 = vmax.f32 %v892, %v893
        %v895 = vpack.c.bf16 %v885, %v885
        %v896 = vpack.c.bf16 %v894, %v894
        %v897 = vunpack.c.l.bf16 %v895
        %v898 = vunpack.c.l.bf16 %v896
        %v899 = vld [vmem:[#allocation2] sm:$0x3]
        %vm902 = vcmask 1041409
        %v903 = vsel %vm902, %v814, %v813
        %v905 = vmax.f32 %v899, %v903
        %vm906 = vcmask 517120
        %907 = vst.msk [vmem:[#allocation2] sm:$0x3] %vm906, %v905
        %v908 = vld [vmem:[#allocation3] sm:$0x3]
        %v911 = vsel %vm902, %v898, %v897
        %v913 = vmax.f32 %v908, %v911
        %914 = vst.msk [vmem:[#allocation3] sm:$0x3] %vm906, %v913
        %p915 = scmp.eq.s32.totalorder %s28, 1
        // Predicated region
        $region233: #{tpu_custom_call.1} parent=207 // pred_check
          %p916 = pneg %p915
        $region234: #{tpu_custom_call.1} parent=207 // pred_check_branch
          %918 = sbr.rel (%p916) target = $region236
        $region235: #{tpu_custom_call.1} parent=207 // pred_region
          %v919 = vld [vmem:[%s8] sm:$0xff]
          %s920 = sld [smem:[#allocation8]]
          %s921 = sld [smem:[#allocation8 + $0x1]]
          %v922 = vld [vmem:[#allocation2] sm:$0x3]
          %v923 = vld [vmem:[#allocation3] sm:$0x3]
          %v924 = vld [vmem:[%s718] sm:$0x3]
          %v925 = vld [vmem:[%s722] sm:$0x3]
          %v926 = vmul.f32 %v924, %v925
          %v927 = vsel %vm906, %v926, 0.0
          %928 = vadd.xlane.f32.xlu0 %v927
          %v929 = vpop.xlane.xlu0 %928
          %v930 = vmul.f32 %v924, %v924
          %v931 = vsel %vm906, %v930, 0.0
          %932 = vadd.xlane.f32.xlu0 %v931
          %v933 = vpop.xlane.xlu0 %932
          %v934 = vrsqrt.pop %v933
          %v935 = vmul.f32 %v934, %v933
          %v936 = vmul.f32 %v935, %v934
          %v937 = vmul.f32 0.5, %v936
          %v938 = vsub.f32 1.5, %v937
          %v939 = vmul.f32 %v934, %v938
          %v940 = vmul.f32 %v933, %v939
          %vm941 = vcmp.eq.f32.partialorder %v933, inf
          %v942 = vsel %vm941, %v933, %v940
          %vm943 = vcmp.eq.f32.partialorder %v933, 0.0
          %v944 = vand.u32 %v933, 2147483648
          %v945 = vsel %vm943, %v944, %v942
          %v946 = vmul.f32 %v925, %v925
          %v947 = vsel %vm906, %v946, 0.0
          %948 = vadd.xlane.f32.xlu0 %v947
          %v949 = vpop.xlane.xlu0 %948
          %v950 = vrsqrt.pop %v949
          %v951 = vmul.f32 %v950, %v949
          %v952 = vmul.f32 %v951, %v950
          %v953 = vmul.f32 0.5, %v952
          %v954 = vsub.f32 1.5, %v953
          %v955 = vmul.f32 %v950, %v954
          %v956 = vmul.f32 %v949, %v955
          %vm957 = vcmp.eq.f32.partialorder %v949, inf
          %v958 = vsel %vm957, %v949, %v956
          %vm959 = vcmp.eq.f32.partialorder %v949, 0.0
          %v960 = vand.u32 %v949, 2147483648
          %v961 = vsel %vm959, %v960, %v958
          %v962 = vmul.f32 %v945, %v961
          %v963 = vmax.f32 %v962, 1e-08
          %v964 = vrcp.pop %v963
          %v965 = vmul.f32 %v963, %v964
          %v966 = vsub.f32 1.0, %v965
          %v967 = vmul.f32 %v964, %v966
          %v968 = vadd.f32 %v964, %v967
          %vm969 = vweird.f32 %v963
          %vm970 = vweird.f32 %v964
          %vm971 = vmor %vm969, %vm970
          %v972 = vsel %vm971, %v964, %v968
          %v973 = vand.u32 2147483647, %v963
          %vm974 = vcmp.eq.f32.partialorder %v973, 8.507059e+37
          %v975 = vand.u32 %v963, 2147483648
          %v976 = vor.u32 1.1754944e-38, %v975
          %v977 = vsel %vm974, %v976, %v972
          %v978 = vmul.f32 %v929, %v977
          %v979 = vld [vmem:[%s6] sm:$0xff]
          %v980 = vld [vmem:[%s6 + $0x8] sm:$0xff]
          %v981 = vld [vmem:[%s6 + $0x10] sm:$0xff]
          %v982 = vld [vmem:[%s6 + $0x18] sm:$0xff]
          %v983 = vld [vmem:[%s6 + $0x20] sm:$0xff]
          %v984 = vld [vmem:[%s6 + $0x28] sm:$0xff]
          %v985 = vld [vmem:[%s6 + $0x30] sm:$0xff]
          %v986 = vld [vmem:[%s6 + $0x38] sm:$0xff]
          %v987 = vld [vmem:[%s7] sm:$0xff]
          %v988 = vld [vmem:[%s7 + $0x8] sm:$0xff]
          %v989 = vld [vmem:[%s7 + $0x10] sm:$0xff]
          %v990 = vld [vmem:[%s7 + $0x18] sm:$0xff]
          %v991 = vld [vmem:[%s7 + $0x20] sm:$0xff]
          %v992 = vld [vmem:[%s7 + $0x28] sm:$0xff]
          %v993 = vld [vmem:[%s7 + $0x30] sm:$0xff]
          %v994 = vld [vmem:[%s7 + $0x38] sm:$0xff]
          %v996 = vsel %vm792, %v923, 0
          %998 = vmatpush.msra.mxu0 0.0
          %999 = vmatpush.msra.mxu0 0.0
          %1000 = vmatpush.msra.mxu0 0.0
          %1001 = vmatpush.msra.mxu0 0.0
          %1002 = vmatpush.msra.mxu0 0.0
          %1003 = vmatpush.msra.mxu0 0.0
          %1004 = vmatpush.msra.mxu0 0.0
          %1005 = vmatpush.msra.mxu0 0.0
          %1006 = vmatpush.msra.mxu0 %v994
          %1007 = vmatpush.msra.mxu0 %v993
          %1008 = vmatpush.msra.mxu0 %v992
          %1009 = vmatpush.msra.mxu0 %v991
          %1010 = vmatpush.msra.mxu0 %v990
          %1011 = vmatpush.msra.mxu0 %v989
          %1012 = vmatpush.msra.mxu0 %v988
          %1013 = vmatpush.msra.mxu0 %v987
          %1014 = vmatmul.f32.gmra.mxu0 %v996
          %v1015 = vpop.f32.mrf.mxu0
          %v1016 = vadd.f32 0.0, %v1015
          %1017 = vdwg.mxu0
          %v1019 = vsel %vm792, %v922, 0
          %1021 = vmatpush.msra.mxu0 0.0
          %1022 = vmatpush.msra.mxu0 0.0
          %1023 = vmatpush.msra.mxu0 0.0
          %1024 = vmatpush.msra.mxu0 0.0
          %1025 = vmatpush.msra.mxu0 0.0
          %1026 = vmatpush.msra.mxu0 0.0
          %1027 = vmatpush.msra.mxu0 0.0
          %1028 = vmatpush.msra.mxu0 0.0
          %1029 = vmatpush.msra.mxu0 %v986
          %1030 = vmatpush.msra.mxu0 %v985
          %1031 = vmatpush.msra.mxu0 %v984
          %1032 = vmatpush.msra.mxu0 %v983
          %1033 = vmatpush.msra.mxu0 %v982
          %1034 = vmatpush.msra.mxu0 %v981
          %1035 = vmatpush.msra.mxu0 %v980
          %1036 = vmatpush.msra.mxu0 %v979
          %1037 = vmatmul.f32.gmra.mxu0 %v1019
          %v1038 = vpop.f32.mrf.mxu0
          %v1039 = vadd.f32 %v1016, %v1038
          %1040 = vdwg.mxu0
          %v1041 = vperm.slane %v919, 0
          %v1042 = vadd.f32 %v1039, %v1041
          %vm1043 = vcmask 254976
          %v1044 = vsel %vm1043, %v1042, 0.0
          %1045 = vadd.xlane.f32.xlu0 %v1044
          %v1046 = vpop.xlane.xlu0 %1045
          %v1047 = vrcp.pop 32.0
          %v1048 = vmul.f32 32.0, %v1047
          %v1049 = vsub.f32 1.0, %v1048
          %v1050 = vmul.f32 %v1047, %v1049
          %v1051 = vadd.f32 %v1047, %v1050
          %vm1052 = vweird.f32 %v1047
          %v1053 = vsel %vm1052, %v1047, %v1051
          %v1054 = vmul.f32 %v1046, %v1053
          %v1055 = vsub.f32 %v1042, %v1054
          %v1056 = vmul.f32 %v1055, %v1055
          %v1057 = vsel %vm1043, %v1056, 0.0
          %1058 = vadd.xlane.f32.xlu0 %v1057
          %v1059 = vpop.xlane.xlu0 %1058
          %v1060 = vmul.f32 %v1059, 0.032258064
          %v1061 = vrsqrt.pop %v1060
          %v1062 = vmul.f32 %v1061, %v1060
          %v1063 = vmul.f32 %v1062, %v1061
          %v1064 = vmul.f32 0.5, %v1063
          %v1065 = vsub.f32 1.5, %v1064
          %v1066 = vmul.f32 %v1061, %v1065
          %v1067 = vmul.f32 %v1060, %v1066
          %vm1068 = vcmp.eq.f32.partialorder %v1060, inf
          %v1069 = vsel %vm1068, %v1060, %v1067
          %vm1070 = vcmp.eq.f32.partialorder %v1060, 0.0
          %v1071 = vand.u32 %v1060, 2147483648
          %v1072 = vsel %vm1070, %v1071, %v1069
          %v1073 = vperm.slane %v919, 1
          %v1074 = vmul.f32 %v1073, %v1055
          %v1075 = vadd.f32 %v1072, 1e-06
          %v1076 = vrcp.pop %v1075
          %v1077 = vmul.f32 %v1075, %v1076
          %v1078 = vsub.f32 1.0, %v1077
          %v1079 = vmul.f32 %v1076, %v1078
          %v1080 = vadd.f32 %v1076, %v1079
          %vm1081 = vweird.f32 %v1075
          %vm1082 = vweird.f32 %v1076
          %vm1083 = vmor %vm1081, %vm1082
          %v1084 = vsel %vm1083, %v1076, %v1080
          %v1085 = vand.u32 2147483647, %v1075
          %vm1086 = vcmp.eq.f32.partialorder %v1085, 8.507059e+37
          %v1087 = vand.u32 %v1075, 2147483648
          %v1088 = vor.u32 1.1754944e-38, %v1087
          %v1089 = vsel %vm1086, %v1088, %v1084
          %v1090 = vmul.f32 %v1074, %v1089
          %v1091 = vperm.slane %v919, 2
          %v1092 = vadd.f32 %v1090, %v1091
          %v1093 = vmax.f32 %v1092, 0.0
          %v1094 = vperm.slane %v919, 3
          %v1095 = vmul.f32 %v1093, %v1094
          %v1096 = vsel %vm1043, %v1095, 0.0
          %1097 = vadd.xlane.f32.xlu0 %v1096
          %v1098 = vpop.xlane.xlu0 %1097
          %v1099 = vstv %s920
          %v1100 = vadd.f32 %v1098, %v1099
          %v1101 = vtanh.pop %v1100
          %v1102 = vperm.slane %v919, 4
          %v1103 = vmul.f32 %v1101, %v1102
          %v1104 = vperm.slane %v919, 5
          %v1105 = vmul.f32 %v978, %v1104
          %v1106 = vadd.f32 %v1103, %v1105
          %v1107 = vperm.slane %v919, 6
          %v1108 = vadd.f32 %v1106, %v1107
          %v1109 = vmax.f32 %v1108, 0.0
          %v1110 = vperm.slane %v919, 7
          %v1111 = vmul.f32 %v1109, %v1110
          %v1112 = vsel %vm1043, %v1111, 0.0
          %1113 = vadd.xlane.f32.xlu0 %v1112
          %v1114 = vpop.xlane.xlu0 %1113
          %v1115 = vstv %s921
          %v1116 = vadd.f32 %v1114, %v1115
          %v1117 = vxor.u32 %v1116, 2147483648
          %v1118 = vmul.f32 %v1117, 1.442695
          %v1119 = vpow.pop %v1118
          %v1120 = vadd.f32 %v1119, 1.0
          %v1121 = vrcp.pop %v1120
          %v1122 = vmul.f32 %v1120, %v1121
          %v1123 = vsub.f32 1.0, %v1122
          %v1124 = vmul.f32 %v1121, %v1123
          %v1125 = vadd.f32 %v1121, %v1124
          %vm1126 = vweird.f32 %v1120
          %vm1127 = vweird.f32 %v1121
          %vm1128 = vmor %vm1126, %vm1127
          %v1129 = vsel %vm1128, %v1121, %v1125
          %v1130 = vand.u32 2147483647, %v1120
          %vm1131 = vcmp.eq.f32.partialorder %v1130, 8.507059e+37
          %v1132 = vand.u32 %v1120, 2147483648
          %v1133 = vor.u32 1.1754944e-38, %v1132
          %v1134 = vsel %vm1131, %v1133, %v1129
          %v1135 = vmul.f32 1.0, %v1134
          %v1136 = vadd.f32 %v1135, %v978
          %v1137 = vmul.f32 %v1136, 0.5
          %v1138 = vlaneseq
          %v1139 = vand.u32 %v1138, 127
          %vm1140 = vcmp.eq.s32.totalorder %v1139, 0
          %vm1141 = vcmp.eq.s32.totalorder %v1139, 1
          %v1142 = vsel %vm1141, %v1101, 0.0
          %v1143 = vsel %vm1140, %v1137, %v1142
          %1144 = vst [vmem:[#allocation11] sm:$0x3] %v1143
        $region236: #{tpu_custom_call.1} parent=207 // pred_fallthru
          _
        // Predicated region
        $region237: #{tpu_custom_call.1} parent=207 // pred_check
          %p1145 = pneg %p301
        $region238: #{tpu_custom_call.1} parent=207 // pred_check_branch
          %1147 = sbr.rel (%p1145) target = $region240
        $region239: #{tpu_custom_call.1} parent=207 // pred_region
          %1149 = vsyncadd [#allocation9], 0
          %s1150 = smul.addr %s27, 2
          %s1151 = scalar_lea.hbm %s10, %s1150
          %s1153 = sshll.u32 [#allocation11], 4
          %s1154 = int_to_ptr.vmem [resolvable:$true] %s1153
          %s1155 = sshll.u32 %s1151, 4
          %s1156 = int_to_ptr.hbm [resolvable:$true] %s1155
          %1158 = dma.vmem_to_hbm [thread:$0]  %s1154, 32, %s1156, [#allocation9]
        $region240: #{tpu_custom_call.1} parent=207 // pred_fallthru
          _
        // Predicated region
        $region241: #{tpu_custom_call.1} parent=207 // pred_check
          %p1159 = pneg %p301
        $region242: #{tpu_custom_call.1} parent=207 // pred_check_branch
          %1161 = sbr.rel (%p1159) target = $region244
        $region243: #{tpu_custom_call.1} parent=207 // pred_region
          %1163 = dma.done [#allocation9], 32
        $region244: #{tpu_custom_call.1} parent=207 // pred_fallthru
          _
      $region208: #{tpu_custom_call.1} parent=5 // pred_fallthru
        _
      %p1164 = scmp.le.s32.totalorder 2, %s18
      // Predicated region
      $region245: #{tpu_custom_call.1} parent=5 // pred_check
        %p1165 = pneg %p1164
      $region246: #{tpu_custom_call.1} parent=5 // pred_check_branch
        %1167 = sbr.rel (%p1165) target = $region248
      $region247: #{tpu_custom_call.1} parent=5 // pred_region
        %s1168 = ssub.s32 %s18, 2
      $region248: #{tpu_custom_call.1} parent=5 // pred_fallthru
        _
    $region6: #{tpu_custom_call.1} parent=1 // loop_footer
      %s22 = sadd.s32 1, %s18
    $region7: #{tpu_custom_call.1} parent=1 // loop_footer_branch
      %17 = sbr.rel target = $region3
    $region8: #{tpu_custom_call.1} parent=1 // loop_exit
      _
    %1169 = vsyncpa [#allocation9], 1
    %s1170 = scalar_lea.sflag [#allocation9], 1
    %1171 = vsyncpa %s1170, 1
    %1172 = vsyncpa [#allocation10], 1
    %s1173 = scalar_lea.sflag [#allocation10], 1
    %1174 = vsyncpa %s1173, 1

</llo_original>
